<compile_context>
chip_gen: v5e
topology: v5e:2x2
jax: 0.10.0
libtpu: 0.0.40
codegen_flags: <defaults>
</compile_context>

<pallas_src>
import jax
import jax.numpy as jnp
import numpy as np
from jax.experimental import pallas as pl
from jax.experimental.pallas import tpu as pltpu

C_HID = 64        # every conv outputs 64 channels; input channels are zero-padded up to 64
N_STAGES = 8
PAD = 8           # aligned row offset where activation data starts inside the scratch


def _pool_out_len(L):
    # MaxPool1d(kernel=3, stride=2, padding=1) output length
    return (L - 1) // 2 + 1


def _make_fused_kernel(L0):
    """All 8 stages fused; the stage loop is unrolled at trace time with static L."""

    def kernel(x_ref, w_ref, shift_ref, o_ref, buf_ref):
        zrow = jnp.zeros((1, C_HID), jnp.float32)
        h = x_ref[0]                         # (L0, 64) stage-1 input (channels zero-padded)
        L = L0
        for s in range(N_STAGES):
            # ---- Conv1d(k=3, s=1, p=1): zero-padded scratch -> 3 shifted views,
            # stacked along lanes -> a single (L, 192) @ (192, 64) MXU matmul.
            buf_ref[PAD - 1:PAD, :] = zrow               # left zero-pad row
            buf_ref[PAD:PAD + L, :] = h                  # aligned bulk store
            buf_ref[PAD + L:PAD + L + 1, :] = zrow       # right zero-pad row
            taps = jnp.concatenate(
                [buf_ref[PAD - 1:PAD - 1 + L, :],        # x[l-1]
                 buf_ref[PAD:PAD + L, :],                # x[l]
                 buf_ref[PAD + 1:PAD + 1 + L, :]],       # x[l+1]
                axis=1)                                   # (L, 3*64)
            y = jnp.dot(taps, w_ref[s], preferred_element_type=jnp.float32)
            y = y + shift_ref[s]                          # folded conv bias (+ BN affine on stage 1)
            a = jnp.maximum(y, 0.0)                       # ReLU

            # ---- MaxPool1d(k=3, s=2, p=1).  Zero padding == PyTorch's -inf padding ONLY
            # because a >= 0 post-ReLU (keep the ReLU before the pool).
            L_out = (L - 1) // 2 + 1
            buf_ref[PAD - 1:PAD, :] = zrow
            buf_ref[PAD:PAD + L, :] = a
            buf_ref[PAD + L:PAD + L + 1, :] = zrow
            # pooled[i] = max(a[2i-1], a[2i], a[2i+1]) via three stride-2 reads.
            h = jnp.maximum(
                jnp.maximum(buf_ref[pl.ds(PAD - 1, L_out, 2), :],
                            buf_ref[pl.ds(PAD, L_out, 2), :]),
                buf_ref[pl.ds(PAD + 1, L_out, 2), :])      # (L_out, 64)
            L = L_out
        o_ref[0] = h.astype(o_ref.dtype)

    return kernel


def _fused_call(x64, W, S, L_final):
    """x64: (B, L0, 64); W: (8, 192, 64); S: (8, 1, 64)."""
    B, L0, _ = x64.shape
    kernel = _make_fused_kernel(L0)
    return pl.pallas_call(
        kernel,
        out_shape=jax.ShapeDtypeStruct((B, L_final, C_HID), jnp.float32),
        grid=(B,),
        in_specs=[
            pl.BlockSpec((1, L0, C_HID), lambda i: (i, 0, 0)),
            pl.BlockSpec((N_STAGES, 3 * C_HID, C_HID), lambda i: (0, 0, 0)),
            pl.BlockSpec((N_STAGES, 1, C_HID), lambda i: (0, 0, 0)),
        ],
        out_specs=pl.BlockSpec((1, L_final, C_HID), lambda i: (i, 0, 0)),
        scratch_shapes=[pltpu.VMEM((L0 + 2 * PAD, C_HID), jnp.float32)],
        compiler_params=pltpu.CompilerParams(
            dimension_semantics=("parallel",)),   # batch-parallel across v7x's 2 TensorCores
    )(x64, W, S)


def _fold_params(params, bn):
    """Fold conv bias (and stage-1 BatchNorm, eval mode) into stacked (192, 64) weights + shift."""
    gamma, beta, mean, var = bn
    eps = 1e-5
    scale = gamma / jnp.sqrt(var + eps)          # (1, 64)
    shift_bn = beta - mean * scale               # (1, 64)
    Ws, shifts = [], []
    for i, (w, b) in enumerate(params):          # w: (3, C_in, 64), b: (1, 64)
        c_in = w.shape[1]
        if i == 0:
            w_eff = w * scale                    # scale over C_out
            shift = b * scale + shift_bn
        else:
            w_eff = w
            shift = b
        w_pad = jnp.zeros((3, C_HID, C_HID), jnp.float32).at[:, :c_in, :].set(w_eff)
        Ws.append(w_pad.reshape(3 * C_HID, C_HID))   # rows [k*64:(k+1)*64] <-> tap k
        shifts.append(shift)
    return jnp.stack(Ws, axis=0), jnp.stack(shifts, axis=0)   # (8,192,64), (8,1,64)


def init_params(key):
    """Deterministic synthetic parameters mirroring the module's __init__ shapes."""
    params = []
    c_in = 3
    for _ in range(N_STAGES):
        key, kw, kb = jax.random.split(key, 3)
        fan_in = 3 * c_in
        w = jax.random.normal(kw, (3, c_in, C_HID), jnp.float32) / jnp.sqrt(float(fan_in))
        b = 0.05 * jax.random.normal(kb, (1, C_HID), jnp.float32)
        params.append((w, b))
        c_in = C_HID
    key, kg, kbt, km, kv = jax.random.split(key, 5)
    gamma = 1.0 + 0.1 * jax.random.normal(kg, (1, C_HID), jnp.float32)
    beta = 0.1 * jax.random.normal(kbt, (1, C_HID), jnp.float32)
    mean = 0.1 * jax.random.normal(km, (1, C_HID), jnp.float32)
    var = jnp.abs(1.0 + 0.1 * jax.random.normal(kv, (1, C_HID), jnp.float32))
    return params, (gamma, beta, mean, var)


@jax.jit
def feature_extraction(x_ncl, params, bn):
    # x_ncl: (B, 3, L) PyTorch NCL layout -> (B, L, C) kernel layout, channels zero-padded to 64.
    B, c_in, L = x_ncl.shape
    x = jnp.transpose(x_ncl, (0, 2, 1)).astype(jnp.float32)
    x64 = jnp.pad(x, ((0, 0), (0, 0), (0, C_HID - c_in)))
    W, S = _fold_params(params, bn)
    L_final = L
    for _ in range(N_STAGES):
        L_final = _pool_out_len(L_final)
    out = _fused_call(x64, W, S, L_final)                 # (B, L_final, 64)
    # torch.flatten(outputs, start_dim=1) on (B, C, L): channel-major flatten.
    return jnp.transpose(out, (0, 2, 1)).reshape(B, -1)


def _reference(x_ncl, params, bn):
    """Pure-JAX reference with identical eval-mode semantics (for a sanity check)."""
    gamma, beta, mean, var = bn
    eps = 1e-5
    x = jnp.transpose(x_ncl, (0, 2, 1)).astype(jnp.float32)   # (B, L, C)
    for i, (w, b) in enumerate(params):
        B, L, _ = x.shape
        xp = jnp.pad(x, ((0, 0), (1, 1), (0, 0)))
        y = (jnp.einsum('blc,cd->bld', xp[:, 0:L, :], w[0])
             + jnp.einsum('blc,cd->bld', xp[:, 1:L + 1, :], w[1])
             + jnp.einsum('blc,cd->bld', xp[:, 2:L + 2, :], w[2])) + b
        if i == 0:
            y = (y - mean) / jnp.sqrt(var + eps) * gamma + beta
        a = jnp.maximum(y, 0.0)
        ap = jnp.pad(a, ((0, 0), (1, 1), (0, 0)))
        L_out = _pool_out_len(L)
        idx = 2 * jnp.arange(L_out)
        x = jnp.maximum(jnp.maximum(ap[:, idx, :], ap[:, idx + 1, :]), ap[:, idx + 2, :])
    return jnp.transpose(x, (0, 2, 1)).reshape(x.shape[0], -1)


if __name__ == "__main__":
    key = jax.random.PRNGKey(0)
    key, kx, kp = jax.random.split(key, 3)

    B, C, L = 2, 3, 256            # NCL input; 8 pools of stride 2: 256 -> 1
    x = jax.random.normal(kx, (B, C, L), jnp.float32)
    params, bn = init_params(kp)

    out = feature_extraction(x, params, bn)
    jax.block_until_ready(out)
    assert out.shape == (B, 64), out.shape

    ref = _reference(x, params, bn)
    np.testing.assert_allclose(np.asarray(out), np.asarray(ref), rtol=5e-2, atol=5e-2)
    print("KERNEL_OK")
</pallas_src>

<mosaic_0001>
module attributes {stable_mosaic.version = 11 : i64} {
  func.func @kernel(%arg0: i32, %arg1: memref<1x256x64xf32, #tpu.memory_space<vmem>>, %arg2: memref<8x192x64xf32, #tpu.memory_space<vmem>>, %arg3: memref<8x1x64xf32, #tpu.memory_space<vmem>>, %arg4: memref<1x1x64xf32, #tpu.memory_space<vmem>>, %arg5: memref<272x64xf32, #tpu.memory_space<vmem>>) attributes {dimension_semantics = [#tpu.dimension_semantics<parallel>], iteration_bounds = array<i64: 2>, scalar_prefetch = 0 : i64, scratch_operands = 1 : i64, tpu.core_type = #tpu.core_type<tc>, window_params = [{transform_indices = @transform_0, window_bounds = array<i64: 1, 256, 64>}, {pipeline_mode = #tpu.pipeline_mode<synchronous>, transform_indices = @transform_1, window_bounds = array<i64: 8, 192, 64>}, {pipeline_mode = #tpu.pipeline_mode<synchronous>, transform_indices = @transform_2, window_bounds = array<i64: 8, 1, 64>}, {transform_indices = @transform_3, window_bounds = array<i64: 1, 1, 64>}]} {
    %cst = arith.constant 0.000000e+00 : f32
    %0 = vector.broadcast %cst : f32 to vector<1x64xf32>
    %c0 = arith.constant 0 : index
    %c0_0 = arith.constant 0 : index
    %c0_1 = arith.constant 0 : index
    %1 = vector.load %arg1[%c0, %c0_0, %c0_1] : memref<1x256x64xf32, #tpu.memory_space<vmem>>, vector<1x256x64xf32>
    %2 = vector.shape_cast %1 : vector<1x256x64xf32> to vector<256x64xf32>
    %c7 = arith.constant 7 : index
    %c0_2 = arith.constant 0 : index
    %3 = vector.load %arg5[%c7, %c0_2] : memref<272x64xf32, #tpu.memory_space<vmem>>, vector<1x64xf32>
    tpu.vector_store %arg5[%c7, %c0_2], %0 {strides = array<i32>} : memref<272x64xf32, #tpu.memory_space<vmem>>, vector<1x64xf32>,
    %c8 = arith.constant 8 : index
    %c0_3 = arith.constant 0 : index
    %4 = vector.load %arg5[%c8, %c0_3] : memref<272x64xf32, #tpu.memory_space<vmem>>, vector<256x64xf32>
    tpu.vector_store %arg5[%c8, %c0_3], %2 {strides = array<i32>} : memref<272x64xf32, #tpu.memory_space<vmem>>, vector<256x64xf32>,
    %c264 = arith.constant 264 : index
    %c0_4 = arith.constant 0 : index
    %5 = vector.load %arg5[%c264, %c0_4] : memref<272x64xf32, #tpu.memory_space<vmem>>, vector<1x64xf32>
    tpu.vector_store %arg5[%c264, %c0_4], %0 {strides = array<i32>} : memref<272x64xf32, #tpu.memory_space<vmem>>, vector<1x64xf32>,
    %c7_5 = arith.constant 7 : index
    %c0_6 = arith.constant 0 : index
    %6 = vector.load %arg5[%c7_5, %c0_6] : memref<272x64xf32, #tpu.memory_space<vmem>>, vector<256x64xf32>
    %c8_7 = arith.constant 8 : index
    %c0_8 = arith.constant 0 : index
    %7 = vector.load %arg5[%c8_7, %c0_8] : memref<272x64xf32, #tpu.memory_space<vmem>>, vector<256x64xf32>
    %c9 = arith.constant 9 : index
    %c0_9 = arith.constant 0 : index
    %8 = vector.load %arg5[%c9, %c0_9] : memref<272x64xf32, #tpu.memory_space<vmem>>, vector<256x64xf32>
    %9 = tpu.concatenate %6, %7, %8 in 1 : vector<256x64xf32>, vector<256x64xf32>, vector<256x64xf32> -> vector<256x192xf32>
    %c0_10 = arith.constant 0 : index
    %c0_11 = arith.constant 0 : index
    %c0_12 = arith.constant 0 : index
    %10 = vector.load %arg2[%c0_10, %c0_11, %c0_12] : memref<8x192x64xf32, #tpu.memory_space<vmem>>, vector<1x192x64xf32>
    %11 = vector.shape_cast %10 : vector<1x192x64xf32> to vector<192x64xf32>
    %cst_13 = arith.constant dense<0.000000e+00> : vector<256x64xf32>
    %12 = tpu.matmul %9, %11, %cst_13 {dimension_numbers = #tpu.dot_dimension_numbers<[1], [0], [0], [1], [0, 0, 1, 1], [], []>} : vector<256x192xf32>, vector<192x64xf32>, vector<256x64xf32> -> vector<256x64xf32>
    %c0_14 = arith.constant 0 : index
    %c0_15 = arith.constant 0 : index
    %c0_16 = arith.constant 0 : index
    %13 = vector.load %arg3[%c0_14, %c0_15, %c0_16] : memref<8x1x64xf32, #tpu.memory_space<vmem>>, vector<1x1x64xf32>
    %14 = vector.shape_cast %13 : vector<1x1x64xf32> to vector<1x64xf32>
    %15 = vector.broadcast %14 : vector<1x64xf32> to vector<256x64xf32>
    %16 = arith.addf %12, %15 : vector<256x64xf32>
    %cst_17 = arith.constant 0.000000e+00 : f32
    %17 = vector.broadcast %cst_17 : f32 to vector<256x64xf32>
    %18 = arith.maximumf %16, %17 : vector<256x64xf32>
    %c7_18 = arith.constant 7 : index
    %c0_19 = arith.constant 0 : index
    %19 = vector.load %arg5[%c7_18, %c0_19] : memref<272x64xf32, #tpu.memory_space<vmem>>, vector<1x64xf32>
    tpu.vector_store %arg5[%c7_18, %c0_19], %0 {strides = array<i32>} : memref<272x64xf32, #tpu.memory_space<vmem>>, vector<1x64xf32>,
    %c8_20 = arith.constant 8 : index
    %c0_21 = arith.constant 0 : index
    %20 = vector.load %arg5[%c8_20, %c0_21] : memref<272x64xf32, #tpu.memory_space<vmem>>, vector<256x64xf32>
    tpu.vector_store %arg5[%c8_20, %c0_21], %18 {strides = array<i32>} : memref<272x64xf32, #tpu.memory_space<vmem>>, vector<256x64xf32>,
    %c264_22 = arith.constant 264 : index
    %c0_23 = arith.constant 0 : index
    %21 = vector.load %arg5[%c264_22, %c0_23] : memref<272x64xf32, #tpu.memory_space<vmem>>, vector<1x64xf32>
    tpu.vector_store %arg5[%c264_22, %c0_23], %0 {strides = array<i32>} : memref<272x64xf32, #tpu.memory_space<vmem>>, vector<1x64xf32>,
    %c7_24 = arith.constant 7 : index
    %c0_25 = arith.constant 0 : index
    %22 = tpu.strided_load %arg5[%c7_24, %c0_25] {strides = array<i32: 2, 1>} : memref<272x64xf32, #tpu.memory_space<vmem>>, vector<128x64xf32>
    %c8_26 = arith.constant 8 : index
    %c0_27 = arith.constant 0 : index
    %23 = tpu.strided_load %arg5[%c8_26, %c0_27] {strides = array<i32: 2, 1>} : memref<272x64xf32, #tpu.memory_space<vmem>>, vector<128x64xf32>
    %24 = arith.maximumf %22, %23 : vector<128x64xf32>
    %c9_28 = arith.constant 9 : index
    %c0_29 = arith.constant 0 : index
    %25 = tpu.strided_load %arg5[%c9_28, %c0_29] {strides = array<i32: 2, 1>} : memref<272x64xf32, #tpu.memory_space<vmem>>, vector<128x64xf32>
    %26 = arith.maximumf %24, %25 : vector<128x64xf32>
    %c7_30 = arith.constant 7 : index
    %c0_31 = arith.constant 0 : index
    %27 = vector.load %arg5[%c7_30, %c0_31] : memref<272x64xf32, #tpu.memory_space<vmem>>, vector<1x64xf32>
    tpu.vector_store %arg5[%c7_30, %c0_31], %0 {strides = array<i32>} : memref<272x64xf32, #tpu.memory_space<vmem>>, vector<1x64xf32>,
    %c8_32 = arith.constant 8 : index
    %c0_33 = arith.constant 0 : index
    %28 = vector.load %arg5[%c8_32, %c0_33] : memref<272x64xf32, #tpu.memory_space<vmem>>, vector<128x64xf32>
    tpu.vector_store %arg5[%c8_32, %c0_33], %26 {strides = array<i32>} : memref<272x64xf32, #tpu.memory_space<vmem>>, vector<128x64xf32>,
    %c136 = arith.constant 136 : index
    %c0_34 = arith.constant 0 : index
    %29 = vector.load %arg5[%c136, %c0_34] : memref<272x64xf32, #tpu.memory_space<vmem>>, vector<1x64xf32>
    tpu.vector_store %arg5[%c136, %c0_34], %0 {strides = array<i32>} : memref<272x64xf32, #tpu.memory_space<vmem>>, vector<1x64xf32>,
    %c7_35 = arith.constant 7 : index
    %c0_36 = arith.constant 0 : index
    %30 = vector.load %arg5[%c7_35, %c0_36] : memref<272x64xf32, #tpu.memory_space<vmem>>, vector<128x64xf32>
    %c8_37 = arith.constant 8 : index
    %c0_38 = arith.constant 0 : index
    %31 = vector.load %arg5[%c8_37, %c0_38] : memref<272x64xf32, #tpu.memory_space<vmem>>, vector<128x64xf32>
    %c9_39 = arith.constant 9 : index
    %c0_40 = arith.constant 0 : index
    %32 = vector.load %arg5[%c9_39, %c0_40] : memref<272x64xf32, #tpu.memory_space<vmem>>, vector<128x64xf32>
    %33 = tpu.concatenate %30, %31, %32 in 1 : vector<128x64xf32>, vector<128x64xf32>, vector<128x64xf32> -> vector<128x192xf32>
    %c1 = arith.constant 1 : index
    %c0_41 = arith.constant 0 : index
    %c0_42 = arith.constant 0 : index
    %34 = vector.load %arg2[%c1, %c0_41, %c0_42] : memref<8x192x64xf32, #tpu.memory_space<vmem>>, vector<1x192x64xf32>
    %35 = vector.shape_cast %34 : vector<1x192x64xf32> to vector<192x64xf32>
    %cst_43 = arith.constant dense<0.000000e+00> : vector<128x64xf32>
    %36 = tpu.matmul %33, %35, %cst_43 {dimension_numbers = #tpu.dot_dimension_numbers<[1], [0], [0], [1], [0, 0, 1, 1], [], []>} : vector<128x192xf32>, vector<192x64xf32>, vector<128x64xf32> -> vector<128x64xf32>
    %c1_44 = arith.constant 1 : index
    %c0_45 = arith.constant 0 : index
    %c0_46 = arith.constant 0 : index
    %37 = vector.load %arg3[%c1_44, %c0_45, %c0_46] : memref<8x1x64xf32, #tpu.memory_space<vmem>>, vector<1x1x64xf32>
    %38 = vector.shape_cast %37 : vector<1x1x64xf32> to vector<1x64xf32>
    %39 = vector.broadcast %38 : vector<1x64xf32> to vector<128x64xf32>
    %40 = arith.addf %36, %39 : vector<128x64xf32>
    %cst_47 = arith.constant 0.000000e+00 : f32
    %41 = vector.broadcast %cst_47 : f32 to vector<128x64xf32>
    %42 = arith.maximumf %40, %41 : vector<128x64xf32>
    %c7_48 = arith.constant 7 : index
    %c0_49 = arith.constant 0 : index
    %43 = vector.load %arg5[%c7_48, %c0_49] : memref<272x64xf32, #tpu.memory_space<vmem>>, vector<1x64xf32>
    tpu.vector_store %arg5[%c7_48, %c0_49], %0 {strides = array<i32>} : memref<272x64xf32, #tpu.memory_space<vmem>>, vector<1x64xf32>,
    %c8_50 = arith.constant 8 : index
    %c0_51 = arith.constant 0 : index
    %44 = vector.load %arg5[%c8_50, %c0_51] : memref<272x64xf32, #tpu.memory_space<vmem>>, vector<128x64xf32>
    tpu.vector_store %arg5[%c8_50, %c0_51], %42 {strides = array<i32>} : memref<272x64xf32, #tpu.memory_space<vmem>>, vector<128x64xf32>,
    %c136_52 = arith.constant 136 : index
    %c0_53 = arith.constant 0 : index
    %45 = vector.load %arg5[%c136_52, %c0_53] : memref<272x64xf32, #tpu.memory_space<vmem>>, vector<1x64xf32>
    tpu.vector_store %arg5[%c136_52, %c0_53], %0 {strides = array<i32>} : memref<272x64xf32, #tpu.memory_space<vmem>>, vector<1x64xf32>,
    %c7_54 = arith.constant 7 : index
    %c0_55 = arith.constant 0 : index
    %46 = tpu.strided_load %arg5[%c7_54, %c0_55] {strides = array<i32: 2, 1>} : memref<272x64xf32, #tpu.memory_space<vmem>>, vector<64x64xf32>
    %c8_56 = arith.constant 8 : index
    %c0_57 = arith.constant 0 : index
    %47 = tpu.strided_load %arg5[%c8_56, %c0_57] {strides = array<i32: 2, 1>} : memref<272x64xf32, #tpu.memory_space<vmem>>, vector<64x64xf32>
    %48 = arith.maximumf %46, %47 : vector<64x64xf32>
    %c9_58 = arith.constant 9 : index
    %c0_59 = arith.constant 0 : index
    %49 = tpu.strided_load %arg5[%c9_58, %c0_59] {strides = array<i32: 2, 1>} : memref<272x64xf32, #tpu.memory_space<vmem>>, vector<64x64xf32>
    %50 = arith.maximumf %48, %49 : vector<64x64xf32>
    %c7_60 = arith.constant 7 : index
    %c0_61 = arith.constant 0 : index
    %51 = vector.load %arg5[%c7_60, %c0_61] : memref<272x64xf32, #tpu.memory_space<vmem>>, vector<1x64xf32>
    tpu.vector_store %arg5[%c7_60, %c0_61], %0 {strides = array<i32>} : memref<272x64xf32, #tpu.memory_space<vmem>>, vector<1x64xf32>,
    %c8_62 = arith.constant 8 : index
    %c0_63 = arith.constant 0 : index
    %52 = vector.load %arg5[%c8_62, %c0_63] : memref<272x64xf32, #tpu.memory_space<vmem>>, vector<64x64xf32>
    tpu.vector_store %arg5[%c8_62, %c0_63], %50 {strides = array<i32>} : memref<272x64xf32, #tpu.memory_space<vmem>>, vector<64x64xf32>,
    %c72 = arith.constant 72 : index
    %c0_64 = arith.constant 0 : index
    %53 = vector.load %arg5[%c72, %c0_64] : memref<272x64xf32, #tpu.memory_space<vmem>>, vector<1x64xf32>
    tpu.vector_store %arg5[%c72, %c0_64], %0 {strides = array<i32>} : memref<272x64xf32, #tpu.memory_space<vmem>>, vector<1x64xf32>,
    %c7_65 = arith.constant 7 : index
    %c0_66 = arith.constant 0 : index
    %54 = vector.load %arg5[%c7_65, %c0_66] : memref<272x64xf32, #tpu.memory_space<vmem>>, vector<64x64xf32>
    %c8_67 = arith.constant 8 : index
    %c0_68 = arith.constant 0 : index
    %55 = vector.load %arg5[%c8_67, %c0_68] : memref<272x64xf32, #tpu.memory_space<vmem>>, vector<64x64xf32>
    %c9_69 = arith.constant 9 : index
    %c0_70 = arith.constant 0 : index
    %56 = vector.load %arg5[%c9_69, %c0_70] : memref<272x64xf32, #tpu.memory_space<vmem>>, vector<64x64xf32>
    %57 = tpu.concatenate %54, %55, %56 in 1 : vector<64x64xf32>, vector<64x64xf32>, vector<64x64xf32> -> vector<64x192xf32>
    %c2 = arith.constant 2 : index
    %c0_71 = arith.constant 0 : index
    %c0_72 = arith.constant 0 : index
    %58 = vector.load %arg2[%c2, %c0_71, %c0_72] : memref<8x192x64xf32, #tpu.memory_space<vmem>>, vector<1x192x64xf32>
    %59 = vector.shape_cast %58 : vector<1x192x64xf32> to vector<192x64xf32>
    %cst_73 = arith.constant dense<0.000000e+00> : vector<64x64xf32>
    %60 = tpu.matmul %57, %59, %cst_73 {dimension_numbers = #tpu.dot_dimension_numbers<[1], [0], [0], [1], [0, 0, 1, 1], [], []>} : vector<64x192xf32>, vector<192x64xf32>, vector<64x64xf32> -> vector<64x64xf32>
    %c2_74 = arith.constant 2 : index
    %c0_75 = arith.constant 0 : index
    %c0_76 = arith.constant 0 : index
    %61 = vector.load %arg3[%c2_74, %c0_75, %c0_76] : memref<8x1x64xf32, #tpu.memory_space<vmem>>, vector<1x1x64xf32>
    %62 = vector.shape_cast %61 : vector<1x1x64xf32> to vector<1x64xf32>
    %63 = vector.broadcast %62 : vector<1x64xf32> to vector<64x64xf32>
    %64 = arith.addf %60, %63 : vector<64x64xf32>
    %cst_77 = arith.constant 0.000000e+00 : f32
    %65 = vector.broadcast %cst_77 : f32 to vector<64x64xf32>
    %66 = arith.maximumf %64, %65 : vector<64x64xf32>
    %c7_78 = arith.constant 7 : index
    %c0_79 = arith.constant 0 : index
    %67 = vector.load %arg5[%c7_78, %c0_79] : memref<272x64xf32, #tpu.memory_space<vmem>>, vector<1x64xf32>
    tpu.vector_store %arg5[%c7_78, %c0_79], %0 {strides = array<i32>} : memref<272x64xf32, #tpu.memory_space<vmem>>, vector<1x64xf32>,
    %c8_80 = arith.constant 8 : index
    %c0_81 = arith.constant 0 : index
    %68 = vector.load %arg5[%c8_80, %c0_81] : memref<272x64xf32, #tpu.memory_space<vmem>>, vector<64x64xf32>
    tpu.vector_store %arg5[%c8_80, %c0_81], %66 {strides = array<i32>} : memref<272x64xf32, #tpu.memory_space<vmem>>, vector<64x64xf32>,
    %c72_82 = arith.constant 72 : index
    %c0_83 = arith.constant 0 : index
    %69 = vector.load %arg5[%c72_82, %c0_83] : memref<272x64xf32, #tpu.memory_space<vmem>>, vector<1x64xf32>
    tpu.vector_store %arg5[%c72_82, %c0_83], %0 {strides = array<i32>} : memref<272x64xf32, #tpu.memory_space<vmem>>, vector<1x64xf32>,
    %c7_84 = arith.constant 7 : index
    %c0_85 = arith.constant 0 : index
    %70 = tpu.strided_load %arg5[%c7_84, %c0_85] {strides = array<i32: 2, 1>} : memref<272x64xf32, #tpu.memory_space<vmem>>, vector<32x64xf32>
    %c8_86 = arith.constant 8 : index
    %c0_87 = arith.constant 0 : index
    %71 = tpu.strided_load %arg5[%c8_86, %c0_87] {strides = array<i32: 2, 1>} : memref<272x64xf32, #tpu.memory_space<vmem>>, vector<32x64xf32>
    %72 = arith.maximumf %70, %71 : vector<32x64xf32>
    %c9_88 = arith.constant 9 : index
    %c0_89 = arith.constant 0 : index
    %73 = tpu.strided_load %arg5[%c9_88, %c0_89] {strides = array<i32: 2, 1>} : memref<272x64xf32, #tpu.memory_space<vmem>>, vector<32x64xf32>
    %74 = arith.maximumf %72, %73 : vector<32x64xf32>
    %c7_90 = arith.constant 7 : index
    %c0_91 = arith.constant 0 : index
    %75 = vector.load %arg5[%c7_90, %c0_91] : memref<272x64xf32, #tpu.memory_space<vmem>>, vector<1x64xf32>
    tpu.vector_store %arg5[%c7_90, %c0_91], %0 {strides = array<i32>} : memref<272x64xf32, #tpu.memory_space<vmem>>, vector<1x64xf32>,
    %c8_92 = arith.constant 8 : index
    %c0_93 = arith.constant 0 : index
    %76 = vector.load %arg5[%c8_92, %c0_93] : memref<272x64xf32, #tpu.memory_space<vmem>>, vector<32x64xf32>
    tpu.vector_store %arg5[%c8_92, %c0_93], %74 {strides = array<i32>} : memref<272x64xf32, #tpu.memory_space<vmem>>, vector<32x64xf32>,
    %c40 = arith.constant 40 : index
    %c0_94 = arith.constant 0 : index
    %77 = vector.load %arg5[%c40, %c0_94] : memref<272x64xf32, #tpu.memory_space<vmem>>, vector<1x64xf32>
    tpu.vector_store %arg5[%c40, %c0_94], %0 {strides = array<i32>} : memref<272x64xf32, #tpu.memory_space<vmem>>, vector<1x64xf32>,
    %c7_95 = arith.constant 7 : index
    %c0_96 = arith.constant 0 : index
    %78 = vector.load %arg5[%c7_95, %c0_96] : memref<272x64xf32, #tpu.memory_space<vmem>>, vector<32x64xf32>
    %c8_97 = arith.constant 8 : index
    %c0_98 = arith.constant 0 : index
    %79 = vector.load %arg5[%c8_97, %c0_98] : memref<272x64xf32, #tpu.memory_space<vmem>>, vector<32x64xf32>
    %c9_99 = arith.constant 9 : index
    %c0_100 = arith.constant 0 : index
    %80 = vector.load %arg5[%c9_99, %c0_100] : memref<272x64xf32, #tpu.memory_space<vmem>>, vector<32x64xf32>
    %81 = tpu.concatenate %78, %79, %80 in 1 : vector<32x64xf32>, vector<32x64xf32>, vector<32x64xf32> -> vector<32x192xf32>
    %c3 = arith.constant 3 : index
    %c0_101 = arith.constant 0 : index
    %c0_102 = arith.constant 0 : index
    %82 = vector.load %arg2[%c3, %c0_101, %c0_102] : memref<8x192x64xf32, #tpu.memory_space<vmem>>, vector<1x192x64xf32>
    %83 = vector.shape_cast %82 : vector<1x192x64xf32> to vector<192x64xf32>
    %cst_103 = arith.constant dense<0.000000e+00> : vector<32x64xf32>
    %84 = tpu.matmul %81, %83, %cst_103 {dimension_numbers = #tpu.dot_dimension_numbers<[1], [0], [0], [1], [0, 0, 1, 1], [], []>} : vector<32x192xf32>, vector<192x64xf32>, vector<32x64xf32> -> vector<32x64xf32>
    %c3_104 = arith.constant 3 : index
    %c0_105 = arith.constant 0 : index
    %c0_106 = arith.constant 0 : index
    %85 = vector.load %arg3[%c3_104, %c0_105, %c0_106] : memref<8x1x64xf32, #tpu.memory_space<vmem>>, vector<1x1x64xf32>
    %86 = vector.shape_cast %85 : vector<1x1x64xf32> to vector<1x64xf32>
    %87 = vector.broadcast %86 : vector<1x64xf32> to vector<32x64xf32>
    %88 = arith.addf %84, %87 : vector<32x64xf32>
    %cst_107 = arith.constant 0.000000e+00 : f32
    %89 = vector.broadcast %cst_107 : f32 to vector<32x64xf32>
    %90 = arith.maximumf %88, %89 : vector<32x64xf32>
    %c7_108 = arith.constant 7 : index
    %c0_109 = arith.constant 0 : index
    %91 = vector.load %arg5[%c7_108, %c0_109] : memref<272x64xf32, #tpu.memory_space<vmem>>, vector<1x64xf32>
    tpu.vector_store %arg5[%c7_108, %c0_109], %0 {strides = array<i32>} : memref<272x64xf32, #tpu.memory_space<vmem>>, vector<1x64xf32>,
    %c8_110 = arith.constant 8 : index
    %c0_111 = arith.constant 0 : index
    %92 = vector.load %arg5[%c8_110, %c0_111] : memref<272x64xf32, #tpu.memory_space<vmem>>, vector<32x64xf32>
    tpu.vector_store %arg5[%c8_110, %c0_111], %90 {strides = array<i32>} : memref<272x64xf32, #tpu.memory_space<vmem>>, vector<32x64xf32>,
    %c40_112 = arith.constant 40 : index
    %c0_113 = arith.constant 0 : index
    %93 = vector.load %arg5[%c40_112, %c0_113] : memref<272x64xf32, #tpu.memory_space<vmem>>, vector<1x64xf32>
    tpu.vector_store %arg5[%c40_112, %c0_113], %0 {strides = array<i32>} : memref<272x64xf32, #tpu.memory_space<vmem>>, vector<1x64xf32>,
    %c7_114 = arith.constant 7 : index
    %c0_115 = arith.constant 0 : index
    %94 = tpu.strided_load %arg5[%c7_114, %c0_115] {strides = array<i32: 2, 1>} : memref<272x64xf32, #tpu.memory_space<vmem>>, vector<16x64xf32>
    %c8_116 = arith.constant 8 : index
    %c0_117 = arith.constant 0 : index
    %95 = tpu.strided_load %arg5[%c8_116, %c0_117] {strides = array<i32: 2, 1>} : memref<272x64xf32, #tpu.memory_space<vmem>>, vector<16x64xf32>
    %96 = arith.maximumf %94, %95 : vector<16x64xf32>
    %c9_118 = arith.constant 9 : index
    %c0_119 = arith.constant 0 : index
    %97 = tpu.strided_load %arg5[%c9_118, %c0_119] {strides = array<i32: 2, 1>} : memref<272x64xf32, #tpu.memory_space<vmem>>, vector<16x64xf32>
    %98 = arith.maximumf %96, %97 : vector<16x64xf32>
    %c7_120 = arith.constant 7 : index
    %c0_121 = arith.constant 0 : index
    %99 = vector.load %arg5[%c7_120, %c0_121] : memref<272x64xf32, #tpu.memory_space<vmem>>, vector<1x64xf32>
    tpu.vector_store %arg5[%c7_120, %c0_121], %0 {strides = array<i32>} : memref<272x64xf32, #tpu.memory_space<vmem>>, vector<1x64xf32>,
    %c8_122 = arith.constant 8 : index
    %c0_123 = arith.constant 0 : index
    %100 = vector.load %arg5[%c8_122, %c0_123] : memref<272x64xf32, #tpu.memory_space<vmem>>, vector<16x64xf32>
    tpu.vector_store %arg5[%c8_122, %c0_123], %98 {strides = array<i32>} : memref<272x64xf32, #tpu.memory_space<vmem>>, vector<16x64xf32>,
    %c24 = arith.constant 24 : index
    %c0_124 = arith.constant 0 : index
    %101 = vector.load %arg5[%c24, %c0_124] : memref<272x64xf32, #tpu.memory_space<vmem>>, vector<1x64xf32>
    tpu.vector_store %arg5[%c24, %c0_124], %0 {strides = array<i32>} : memref<272x64xf32, #tpu.memory_space<vmem>>, vector<1x64xf32>,
    %c7_125 = arith.constant 7 : index
    %c0_126 = arith.constant 0 : index
    %102 = vector.load %arg5[%c7_125, %c0_126] : memref<272x64xf32, #tpu.memory_space<vmem>>, vector<16x64xf32>
    %c8_127 = arith.constant 8 : index
    %c0_128 = arith.constant 0 : index
    %103 = vector.load %arg5[%c8_127, %c0_128] : memref<272x64xf32, #tpu.memory_space<vmem>>, vector<16x64xf32>
    %c9_129 = arith.constant 9 : index
    %c0_130 = arith.constant 0 : index
    %104 = vector.load %arg5[%c9_129, %c0_130] : memref<272x64xf32, #tpu.memory_space<vmem>>, vector<16x64xf32>
    %105 = tpu.concatenate %102, %103, %104 in 1 : vector<16x64xf32>, vector<16x64xf32>, vector<16x64xf32> -> vector<16x192xf32>
    %c4 = arith.constant 4 : index
    %c0_131 = arith.constant 0 : index
    %c0_132 = arith.constant 0 : index
    %106 = vector.load %arg2[%c4, %c0_131, %c0_132] : memref<8x192x64xf32, #tpu.memory_space<vmem>>, vector<1x192x64xf32>
    %107 = vector.shape_cast %106 : vector<1x192x64xf32> to vector<192x64xf32>
    %cst_133 = arith.constant dense<0.000000e+00> : vector<16x64xf32>
    %108 = tpu.matmul %105, %107, %cst_133 {dimension_numbers = #tpu.dot_dimension_numbers<[1], [0], [0], [1], [0, 0, 1, 1], [], []>} : vector<16x192xf32>, vector<192x64xf32>, vector<16x64xf32> -> vector<16x64xf32>
    %c4_134 = arith.constant 4 : index
    %c0_135 = arith.constant 0 : index
    %c0_136 = arith.constant 0 : index
    %109 = vector.load %arg3[%c4_134, %c0_135, %c0_136] : memref<8x1x64xf32, #tpu.memory_space<vmem>>, vector<1x1x64xf32>
    %110 = vector.shape_cast %109 : vector<1x1x64xf32> to vector<1x64xf32>
    %111 = vector.broadcast %110 : vector<1x64xf32> to vector<16x64xf32>
    %112 = arith.addf %108, %111 : vector<16x64xf32>
    %cst_137 = arith.constant 0.000000e+00 : f32
    %113 = vector.broadcast %cst_137 : f32 to vector<16x64xf32>
    %114 = arith.maximumf %112, %113 : vector<16x64xf32>
    %c7_138 = arith.constant 7 : index
    %c0_139 = arith.constant 0 : index
    %115 = vector.load %arg5[%c7_138, %c0_139] : memref<272x64xf32, #tpu.memory_space<vmem>>, vector<1x64xf32>
    tpu.vector_store %arg5[%c7_138, %c0_139], %0 {strides = array<i32>} : memref<272x64xf32, #tpu.memory_space<vmem>>, vector<1x64xf32>,
    %c8_140 = arith.constant 8 : index
    %c0_141 = arith.constant 0 : index
    %116 = vector.load %arg5[%c8_140, %c0_141] : memref<272x64xf32, #tpu.memory_space<vmem>>, vector<16x64xf32>
    tpu.vector_store %arg5[%c8_140, %c0_141], %114 {strides = array<i32>} : memref<272x64xf32, #tpu.memory_space<vmem>>, vector<16x64xf32>,
    %c24_142 = arith.constant 24 : index
    %c0_143 = arith.constant 0 : index
    %117 = vector.load %arg5[%c24_142, %c0_143] : memref<272x64xf32, #tpu.memory_space<vmem>>, vector<1x64xf32>
    tpu.vector_store %arg5[%c24_142, %c0_143], %0 {strides = array<i32>} : memref<272x64xf32, #tpu.memory_space<vmem>>, vector<1x64xf32>,
    %c7_144 = arith.constant 7 : index
    %c0_145 = arith.constant 0 : index
    %118 = tpu.strided_load %arg5[%c7_144, %c0_145] {strides = array<i32: 2, 1>} : memref<272x64xf32, #tpu.memory_space<vmem>>, vector<8x64xf32>
    %c8_146 = arith.constant 8 : index
    %c0_147 = arith.constant 0 : index
    %119 = tpu.strided_load %arg5[%c8_146, %c0_147] {strides = array<i32: 2, 1>} : memref<272x64xf32, #tpu.memory_space<vmem>>, vector<8x64xf32>
    %120 = arith.maximumf %118, %119 : vector<8x64xf32>
    %c9_148 = arith.constant 9 : index
    %c0_149 = arith.constant 0 : index
    %121 = tpu.strided_load %arg5[%c9_148, %c0_149] {strides = array<i32: 2, 1>} : memref<272x64xf32, #tpu.memory_space<vmem>>, vector<8x64xf32>
    %122 = arith.maximumf %120, %121 : vector<8x64xf32>
    %c7_150 = arith.constant 7 : index
    %c0_151 = arith.constant 0 : index
    %123 = vector.load %arg5[%c7_150, %c0_151] : memref<272x64xf32, #tpu.memory_space<vmem>>, vector<1x64xf32>
    tpu.vector_store %arg5[%c7_150, %c0_151], %0 {strides = array<i32>} : memref<272x64xf32, #tpu.memory_space<vmem>>, vector<1x64xf32>,
    %c8_152 = arith.constant 8 : index
    %c0_153 = arith.constant 0 : index
    %124 = vector.load %arg5[%c8_152, %c0_153] : memref<272x64xf32, #tpu.memory_space<vmem>>, vector<8x64xf32>
    tpu.vector_store %arg5[%c8_152, %c0_153], %122 {strides = array<i32>} : memref<272x64xf32, #tpu.memory_space<vmem>>, vector<8x64xf32>,
    %c16 = arith.constant 16 : index
    %c0_154 = arith.constant 0 : index
    %125 = vector.load %arg5[%c16, %c0_154] : memref<272x64xf32, #tpu.memory_space<vmem>>, vector<1x64xf32>
    tpu.vector_store %arg5[%c16, %c0_154], %0 {strides = array<i32>} : memref<272x64xf32, #tpu.memory_space<vmem>>, vector<1x64xf32>,
    %c7_155 = arith.constant 7 : index
    %c0_156 = arith.constant 0 : index
    %126 = vector.load %arg5[%c7_155, %c0_156] : memref<272x64xf32, #tpu.memory_space<vmem>>, vector<8x64xf32>
    %c8_157 = arith.constant 8 : index
    %c0_158 = arith.constant 0 : index
    %127 = vector.load %arg5[%c8_157, %c0_158] : memref<272x64xf32, #tpu.memory_space<vmem>>, vector<8x64xf32>
    %c9_159 = arith.constant 9 : index
    %c0_160 = arith.constant 0 : index
    %128 = vector.load %arg5[%c9_159, %c0_160] : memref<272x64xf32, #tpu.memory_space<vmem>>, vector<8x64xf32>
    %129 = tpu.concatenate %126, %127, %128 in 1 : vector<8x64xf32>, vector<8x64xf32>, vector<8x64xf32> -> vector<8x192xf32>
    %c5 = arith.constant 5 : index
    %c0_161 = arith.constant 0 : index
    %c0_162 = arith.constant 0 : index
    %130 = vector.load %arg2[%c5, %c0_161, %c0_162] : memref<8x192x64xf32, #tpu.memory_space<vmem>>, vector<1x192x64xf32>
    %131 = vector.shape_cast %130 : vector<1x192x64xf32> to vector<192x64xf32>
    %cst_163 = arith.constant dense<0.000000e+00> : vector<8x64xf32>
    %132 = tpu.matmul %129, %131, %cst_163 {dimension_numbers = #tpu.dot_dimension_numbers<[1], [0], [0], [1], [0, 0, 1, 1], [], []>} : vector<8x192xf32>, vector<192x64xf32>, vector<8x64xf32> -> vector<8x64xf32>
    %c5_164 = arith.constant 5 : index
    %c0_165 = arith.constant 0 : index
    %c0_166 = arith.constant 0 : index
    %133 = vector.load %arg3[%c5_164, %c0_165, %c0_166] : memref<8x1x64xf32, #tpu.memory_space<vmem>>, vector<1x1x64xf32>
    %134 = vector.shape_cast %133 : vector<1x1x64xf32> to vector<1x64xf32>
    %135 = vector.broadcast %134 : vector<1x64xf32> to vector<8x64xf32>
    %136 = arith.addf %132, %135 : vector<8x64xf32>
    %cst_167 = arith.constant 0.000000e+00 : f32
    %137 = vector.broadcast %cst_167 : f32 to vector<8x64xf32>
    %138 = arith.maximumf %136, %137 : vector<8x64xf32>
    %c7_168 = arith.constant 7 : index
    %c0_169 = arith.constant 0 : index
    %139 = vector.load %arg5[%c7_168, %c0_169] : memref<272x64xf32, #tpu.memory_space<vmem>>, vector<1x64xf32>
    tpu.vector_store %arg5[%c7_168, %c0_169], %0 {strides = array<i32>} : memref<272x64xf32, #tpu.memory_space<vmem>>, vector<1x64xf32>,
    %c8_170 = arith.constant 8 : index
    %c0_171 = arith.constant 0 : index
    %140 = vector.load %arg5[%c8_170, %c0_171] : memref<272x64xf32, #tpu.memory_space<vmem>>, vector<8x64xf32>
    tpu.vector_store %arg5[%c8_170, %c0_171], %138 {strides = array<i32>} : memref<272x64xf32, #tpu.memory_space<vmem>>, vector<8x64xf32>,
    %c16_172 = arith.constant 16 : index
    %c0_173 = arith.constant 0 : index
    %141 = vector.load %arg5[%c16_172, %c0_173] : memref<272x64xf32, #tpu.memory_space<vmem>>, vector<1x64xf32>
    tpu.vector_store %arg5[%c16_172, %c0_173], %0 {strides = array<i32>} : memref<272x64xf32, #tpu.memory_space<vmem>>, vector<1x64xf32>,
    %c7_174 = arith.constant 7 : index
    %c0_175 = arith.constant 0 : index
    %142 = tpu.strided_load %arg5[%c7_174, %c0_175] {strides = array<i32: 2, 1>} : memref<272x64xf32, #tpu.memory_space<vmem>>, vector<4x64xf32>
    %c8_176 = arith.constant 8 : index
    %c0_177 = arith.constant 0 : index
    %143 = tpu.strided_load %arg5[%c8_176, %c0_177] {strides = array<i32: 2, 1>} : memref<272x64xf32, #tpu.memory_space<vmem>>, vector<4x64xf32>
    %144 = arith.maximumf %142, %143 : vector<4x64xf32>
    %c9_178 = arith.constant 9 : index
    %c0_179 = arith.constant 0 : index
    %145 = tpu.strided_load %arg5[%c9_178, %c0_179] {strides = array<i32: 2, 1>} : memref<272x64xf32, #tpu.memory_space<vmem>>, vector<4x64xf32>
    %146 = arith.maximumf %144, %145 : vector<4x64xf32>
    %c7_180 = arith.constant 7 : index
    %c0_181 = arith.constant 0 : index
    %147 = vector.load %arg5[%c7_180, %c0_181] : memref<272x64xf32, #tpu.memory_space<vmem>>, vector<1x64xf32>
    tpu.vector_store %arg5[%c7_180, %c0_181], %0 {strides = array<i32>} : memref<272x64xf32, #tpu.memory_space<vmem>>, vector<1x64xf32>,
    %c8_182 = arith.constant 8 : index
    %c0_183 = arith.constant 0 : index
    %148 = vector.load %arg5[%c8_182, %c0_183] : memref<272x64xf32, #tpu.memory_space<vmem>>, vector<4x64xf32>
    tpu.vector_store %arg5[%c8_182, %c0_183], %146 {strides = array<i32>} : memref<272x64xf32, #tpu.memory_space<vmem>>, vector<4x64xf32>,
    %c12 = arith.constant 12 : index
    %c0_184 = arith.constant 0 : index
    %149 = vector.load %arg5[%c12, %c0_184] : memref<272x64xf32, #tpu.memory_space<vmem>>, vector<1x64xf32>
    tpu.vector_store %arg5[%c12, %c0_184], %0 {strides = array<i32>} : memref<272x64xf32, #tpu.memory_space<vmem>>, vector<1x64xf32>,
    %c7_185 = arith.constant 7 : index
    %c0_186 = arith.constant 0 : index
    %150 = vector.load %arg5[%c7_185, %c0_186] : memref<272x64xf32, #tpu.memory_space<vmem>>, vector<4x64xf32>
    %c8_187 = arith.constant 8 : index
    %c0_188 = arith.constant 0 : index
    %151 = vector.load %arg5[%c8_187, %c0_188] : memref<272x64xf32, #tpu.memory_space<vmem>>, vector<4x64xf32>
    %c9_189 = arith.constant 9 : index
    %c0_190 = arith.constant 0 : index
    %152 = vector.load %arg5[%c9_189, %c0_190] : memref<272x64xf32, #tpu.memory_space<vmem>>, vector<4x64xf32>
    %153 = tpu.concatenate %150, %151, %152 in 1 : vector<4x64xf32>, vector<4x64xf32>, vector<4x64xf32> -> vector<4x192xf32>
    %c6 = arith.constant 6 : index
    %c0_191 = arith.constant 0 : index
    %c0_192 = arith.constant 0 : index
    %154 = vector.load %arg2[%c6, %c0_191, %c0_192] : memref<8x192x64xf32, #tpu.memory_space<vmem>>, vector<1x192x64xf32>
    %155 = vector.shape_cast %154 : vector<1x192x64xf32> to vector<192x64xf32>
    %cst_193 = arith.constant dense<0.000000e+00> : vector<4x64xf32>
    %156 = tpu.matmul %153, %155, %cst_193 {dimension_numbers = #tpu.dot_dimension_numbers<[1], [0], [0], [1], [0, 0, 1, 1], [], []>} : vector<4x192xf32>, vector<192x64xf32>, vector<4x64xf32> -> vector<4x64xf32>
    %c6_194 = arith.constant 6 : index
    %c0_195 = arith.constant 0 : index
    %c0_196 = arith.constant 0 : index
    %157 = vector.load %arg3[%c6_194, %c0_195, %c0_196] : memref<8x1x64xf32, #tpu.memory_space<vmem>>, vector<1x1x64xf32>
    %158 = vector.shape_cast %157 : vector<1x1x64xf32> to vector<1x64xf32>
    %159 = vector.broadcast %158 : vector<1x64xf32> to vector<4x64xf32>
    %160 = arith.addf %156, %159 : vector<4x64xf32>
    %cst_197 = arith.constant 0.000000e+00 : f32
    %161 = vector.broadcast %cst_197 : f32 to vector<4x64xf32>
    %162 = arith.maximumf %160, %161 : vector<4x64xf32>
    %c7_198 = arith.constant 7 : index
    %c0_199 = arith.constant 0 : index
    %163 = vector.load %arg5[%c7_198, %c0_199] : memref<272x64xf32, #tpu.memory_space<vmem>>, vector<1x64xf32>
    tpu.vector_store %arg5[%c7_198, %c0_199], %0 {strides = array<i32>} : memref<272x64xf32, #tpu.memory_space<vmem>>, vector<1x64xf32>,
    %c8_200 = arith.constant 8 : index
    %c0_201 = arith.constant 0 : index
    %164 = vector.load %arg5[%c8_200, %c0_201] : memref<272x64xf32, #tpu.memory_space<vmem>>, vector<4x64xf32>
    tpu.vector_store %arg5[%c8_200, %c0_201], %162 {strides = array<i32>} : memref<272x64xf32, #tpu.memory_space<vmem>>, vector<4x64xf32>,
    %c12_202 = arith.constant 12 : index
    %c0_203 = arith.constant 0 : index
    %165 = vector.load %arg5[%c12_202, %c0_203] : memref<272x64xf32, #tpu.memory_space<vmem>>, vector<1x64xf32>
    tpu.vector_store %arg5[%c12_202, %c0_203], %0 {strides = array<i32>} : memref<272x64xf32, #tpu.memory_space<vmem>>, vector<1x64xf32>,
    %c7_204 = arith.constant 7 : index
    %c0_205 = arith.constant 0 : index
    %166 = tpu.strided_load %arg5[%c7_204, %c0_205] {strides = array<i32: 2, 1>} : memref<272x64xf32, #tpu.memory_space<vmem>>, vector<2x64xf32>
    %c8_206 = arith.constant 8 : index
    %c0_207 = arith.constant 0 : index
    %167 = tpu.strided_load %arg5[%c8_206, %c0_207] {strides = array<i32: 2, 1>} : memref<272x64xf32, #tpu.memory_space<vmem>>, vector<2x64xf32>
    %168 = arith.maximumf %166, %167 : vector<2x64xf32>
    %c9_208 = arith.constant 9 : index
    %c0_209 = arith.constant 0 : index
    %169 = tpu.strided_load %arg5[%c9_208, %c0_209] {strides = array<i32: 2, 1>} : memref<272x64xf32, #tpu.memory_space<vmem>>, vector<2x64xf32>
    %170 = arith.maximumf %168, %169 : vector<2x64xf32>
    %c7_210 = arith.constant 7 : index
    %c0_211 = arith.constant 0 : index
    %171 = vector.load %arg5[%c7_210, %c0_211] : memref<272x64xf32, #tpu.memory_space<vmem>>, vector<1x64xf32>
    tpu.vector_store %arg5[%c7_210, %c0_211], %0 {strides = array<i32>} : memref<272x64xf32, #tpu.memory_space<vmem>>, vector<1x64xf32>,
    %c8_212 = arith.constant 8 : index
    %c0_213 = arith.constant 0 : index
    %172 = vector.load %arg5[%c8_212, %c0_213] : memref<272x64xf32, #tpu.memory_space<vmem>>, vector<2x64xf32>
    tpu.vector_store %arg5[%c8_212, %c0_213], %170 {strides = array<i32>} : memref<272x64xf32, #tpu.memory_space<vmem>>, vector<2x64xf32>,
    %c10 = arith.constant 10 : index
    %c0_214 = arith.constant 0 : index
    %173 = vector.load %arg5[%c10, %c0_214] : memref<272x64xf32, #tpu.memory_space<vmem>>, vector<1x64xf32>
    tpu.vector_store %arg5[%c10, %c0_214], %0 {strides = array<i32>} : memref<272x64xf32, #tpu.memory_space<vmem>>, vector<1x64xf32>,
    %c7_215 = arith.constant 7 : index
    %c0_216 = arith.constant 0 : index
    %174 = vector.load %arg5[%c7_215, %c0_216] : memref<272x64xf32, #tpu.memory_space<vmem>>, vector<2x64xf32>
    %c8_217 = arith.constant 8 : index
    %c0_218 = arith.constant 0 : index
    %175 = vector.load %arg5[%c8_217, %c0_218] : memref<272x64xf32, #tpu.memory_space<vmem>>, vector<2x64xf32>
    %c9_219 = arith.constant 9 : index
    %c0_220 = arith.constant 0 : index
    %176 = vector.load %arg5[%c9_219, %c0_220] : memref<272x64xf32, #tpu.memory_space<vmem>>, vector<2x64xf32>
    %177 = tpu.concatenate %174, %175, %176 in 1 : vector<2x64xf32>, vector<2x64xf32>, vector<2x64xf32> -> vector<2x192xf32>
    %c7_221 = arith.constant 7 : index
    %c0_222 = arith.constant 0 : index
    %c0_223 = arith.constant 0 : index
    %178 = vector.load %arg2[%c7_221, %c0_222, %c0_223] : memref<8x192x64xf32, #tpu.memory_space<vmem>>, vector<1x192x64xf32>
    %179 = vector.shape_cast %178 : vector<1x192x64xf32> to vector<192x64xf32>
    %cst_224 = arith.constant dense<0.000000e+00> : vector<2x64xf32>
    %180 = tpu.matmul %177, %179, %cst_224 {dimension_numbers = #tpu.dot_dimension_numbers<[1], [0], [0], [1], [0, 0, 1, 1], [], []>} : vector<2x192xf32>, vector<192x64xf32>, vector<2x64xf32> -> vector<2x64xf32>
    %c7_225 = arith.constant 7 : index
    %c0_226 = arith.constant 0 : index
    %c0_227 = arith.constant 0 : index
    %181 = vector.load %arg3[%c7_225, %c0_226, %c0_227] : memref<8x1x64xf32, #tpu.memory_space<vmem>>, vector<1x1x64xf32>
    %182 = vector.shape_cast %181 : vector<1x1x64xf32> to vector<1x64xf32>
    %183 = vector.broadcast %182 : vector<1x64xf32> to vector<2x64xf32>
    %184 = arith.addf %180, %183 : vector<2x64xf32>
    %cst_228 = arith.constant 0.000000e+00 : f32
    %185 = vector.broadcast %cst_228 : f32 to vector<2x64xf32>
    %186 = arith.maximumf %184, %185 : vector<2x64xf32>
    %c7_229 = arith.constant 7 : index
    %c0_230 = arith.constant 0 : index
    %187 = vector.load %arg5[%c7_229, %c0_230] : memref<272x64xf32, #tpu.memory_space<vmem>>, vector<1x64xf32>
    tpu.vector_store %arg5[%c7_229, %c0_230], %0 {strides = array<i32>} : memref<272x64xf32, #tpu.memory_space<vmem>>, vector<1x64xf32>,
    %c8_231 = arith.constant 8 : index
    %c0_232 = arith.constant 0 : index
    %188 = vector.load %arg5[%c8_231, %c0_232] : memref<272x64xf32, #tpu.memory_space<vmem>>, vector<2x64xf32>
    tpu.vector_store %arg5[%c8_231, %c0_232], %186 {strides = array<i32>} : memref<272x64xf32, #tpu.memory_space<vmem>>, vector<2x64xf32>,
    %c10_233 = arith.constant 10 : index
    %c0_234 = arith.constant 0 : index
    %189 = vector.load %arg5[%c10_233, %c0_234] : memref<272x64xf32, #tpu.memory_space<vmem>>, vector<1x64xf32>
    tpu.vector_store %arg5[%c10_233, %c0_234], %0 {strides = array<i32>} : memref<272x64xf32, #tpu.memory_space<vmem>>, vector<1x64xf32>,
    %c7_235 = arith.constant 7 : index
    %c0_236 = arith.constant 0 : index
    %190 = tpu.strided_load %arg5[%c7_235, %c0_236] {strides = array<i32: 2, 1>} : memref<272x64xf32, #tpu.memory_space<vmem>>, vector<1x64xf32>
    %c8_237 = arith.constant 8 : index
    %c0_238 = arith.constant 0 : index
    %191 = tpu.strided_load %arg5[%c8_237, %c0_238] {strides = array<i32: 2, 1>} : memref<272x64xf32, #tpu.memory_space<vmem>>, vector<1x64xf32>
    %192 = arith.maximumf %190, %191 : vector<1x64xf32>
    %c9_239 = arith.constant 9 : index
    %c0_240 = arith.constant 0 : index
    %193 = tpu.strided_load %arg5[%c9_239, %c0_240] {strides = array<i32: 2, 1>} : memref<272x64xf32, #tpu.memory_space<vmem>>, vector<1x64xf32>
    %194 = arith.maximumf %192, %193 : vector<1x64xf32>
    %c0_241 = arith.constant 0 : index
    %c0_242 = arith.constant 0 : index
    %c0_243 = arith.constant 0 : index
    %195 = vector.load %arg4[%c0_241, %c0_242, %c0_243] : memref<1x1x64xf32, #tpu.memory_space<vmem>>, vector<1x1x64xf32>
    %196 = vector.shape_cast %195 : vector<1x1x64xf32> to vector<1x64xf32>
    %197 = vector.shape_cast %194 : vector<1x64xf32> to vector<1x1x64xf32>
    tpu.vector_store %arg4[%c0_241, %c0_242, %c0_243], %197 {strides = array<i32>} : memref<1x1x64xf32, #tpu.memory_space<vmem>>, vector<1x1x64xf32>,
    return
  }
  func.func @transform_0(%arg0: i32) -> (i32, i32, i32) {
    %c0_i32 = arith.constant 0 : i32
    %c0_i32_0 = arith.constant 0 : i32
    %c0_i32_1 = arith.constant 0 : i32
    return %arg0, %c0_i32, %c0_i32_0 : i32, i32, i32
  }
  func.func @transform_1(%arg0: i32) -> (i32, i32, i32) {
    %c0_i32 = arith.constant 0 : i32
    %c0_i32_0 = arith.constant 0 : i32
    %c0_i32_1 = arith.constant 0 : i32
    %c0_i32_2 = arith.constant 0 : i32
    return %c0_i32, %c0_i32_0, %c0_i32_1 : i32, i32, i32
  }
  func.func @transform_2(%arg0: i32) -> (i32, i32, i32) {
    %c0_i32 = arith.constant 0 : i32
    %c0_i32_0 = arith.constant 0 : i32
    %c0_i32_1 = arith.constant 0 : i32
    %c0_i32_2 = arith.constant 0 : i32
    return %c0_i32, %c0_i32_0, %c0_i32_1 : i32, i32, i32
  }
  func.func @transform_3(%arg0: i32) -> (i32, i32, i32) {
    %c0_i32 = arith.constant 0 : i32
    %c0_i32_0 = arith.constant 0 : i32
    %c0_i32_1 = arith.constant 0 : i32
    return %arg0, %c0_i32, %c0_i32_0 : i32, i32, i32
  }
}

</mosaic_0001>

<llo_original>
// kernel: feature_extraction.1
$region0: #{feature_extraction.1}
  #allocation0 [shape = 'u32[]', space=smem, size = 0x4, offset = 0x4, fixed_abs, tag = 'smem constant byte address 0x4 - core index']
  #allocation1 [shape = 'u32[72,128]{1,0:T(1,128)}', space=vmem, size = 0x9000, scoped, tag = 'internal scratch']
  #allocation2 [shape = 'f32[272,64]{1,0:T(8,128)}', space=vmem, size = 0x22000, scoped, tag = 'scratch operand']
  %s0 = inlined_call_operand.vmem [shape: f32[2,256,64], index: 0, kind: input, shape index: {}]
  %s1 = inlined_call_operand.vmem [shape: f32[8,192,64], index: 1, kind: input, shape index: {}]
  %s2 = inlined_call_operand.vmem [shape: f32[8,1,64], index: 2, kind: input, shape index: {}]
  %s3 = inlined_call_operand.hbm [shape: f32[2,1,64], index: 3, kind: output, shape index: {}]
  %s4 = sld [smem:[#allocation0]]
  $region45: #{feature_extraction.1} parent=0
    _
  %s6 = ssub.s32 1, %s4
  %s7 = scalar_select 0, %s6, %s4
  $region1: #{feature_extraction.1} parent=0
    #allocation3 [shape = 'u8[1024]{0}', space=vmem, size = 0x400, scoped, tag = 'output window, operand 0']
    #allocation4 [shape = 's32[2]{0}', space=sflag, size = 0x8, scoped, tag = 'scoped memory for feature_extraction.1']
    %8 = vsyncpa [#allocation4], 0
    %s9 = scalar_lea.sflag [#allocation4], 1
    %10 = vsyncpa %s9, 0
    loop: start=0, step=1, limit=4
    $region2: #{feature_extraction.1} parent=1 // loop_pre_header
      _
    $region3: #{feature_extraction.1} parent=1 // loop_header
      %s12 = sphi 0, %s16
      %p13 = scmp.ge.s32.totalorder %s12, 4
      %s22 = sphi 0, %s24
      %s25 = sphi 0, %s22
      %s26 = sphi 0, %s25
      %s42 = sphi 0, %s26
      %s46 = sphi 0, %s46
      %s48 = sphi 0, %s46
      %s49 = sphi 0, %s48
      %s63 = sphi 0, %s49
      %s67 = sphi 0, %s67
      %s69 = sphi 0, %s67
      %s70 = sphi 0, %s69
      %s84 = sphi 0, %s70
      %s90 = sphi 0, %s92
      %s93 = sphi 0, %s90
      %s94 = sphi 0, %s93
      %s110 = sphi 0, %s94
    $region4: #{feature_extraction.1} parent=1 // loop_header_branch
      %15 = sbr.rel (%p13) target = $region8
    $region5: #{feature_extraction.1} parent=1 // loop_body
      %s17 = ssub.s32 %s12, 1
      %s18 = ssub.s32 %s12, 2
      %s19 = sadd.s32 %s12, 1
      %s20 = ssub.s32 %s12, %s19
      %p21 = scmp.eq.s32.totalorder %s20, 0
      %s23 = sadd.s32 %s22, 1
      %s24 = scalar_select %p21, %s22, %s23
      %p27 = pneg %p21
      %p28 = scmp.eq.s32.totalorder %s12, 1
      %p29 = por %p27, %p28
      %p30 = scmp.ne.s32.totalorder %s22, %s25
      %p31 = scmp.eq.s32.totalorder %s12, 0
      %p32 = por %p30, %p31
      %p33 = scmp.ne.s32.totalorder %s22, %s25
      %p34 = scmp.eq.s32.totalorder %s17, 1
      %p35 = por %p33, %p34
      %p36 = scmp.ne.s32.totalorder %s25, %s26
      %p37 = scmp.eq.s32.totalorder %s17, 0
      %p38 = por %p36, %p37
      %p39 = scmp.ne.s32.totalorder %s25, %s26
      %p40 = scmp.eq.s32.totalorder %s18, 1
      %p41 = por %p39, %p40
      %p43 = scmp.ne.s32.totalorder %s26, %s42
      %p44 = scmp.eq.s32.totalorder %s18, 0
      %p45 = por %p43, %p44
      %s47 = sadd.s32 %s46, 1
      %p50 = scmp.eq.s32.totalorder %s12, 1
      %p51 = scmp.ne.s32.totalorder %s46, %s48
      %p52 = scmp.eq.s32.totalorder %s12, 0
      %p53 = por %p51, %p52
      %p54 = scmp.ne.s32.totalorder %s46, %s48
      %p55 = scmp.eq.s32.totalorder %s17, 1
      %p56 = por %p54, %p55
      %p57 = scmp.ne.s32.totalorder %s48, %s49
      %p58 = scmp.eq.s32.totalorder %s17, 0
      %p59 = por %p57, %p58
      %p60 = scmp.ne.s32.totalorder %s48, %s49
      %p61 = scmp.eq.s32.totalorder %s18, 1
      %p62 = por %p60, %p61
      %p64 = scmp.ne.s32.totalorder %s49, %s63
      %p65 = scmp.eq.s32.totalorder %s18, 0
      %p66 = por %p64, %p65
      %s68 = sadd.s32 %s67, 1
      %p71 = scmp.eq.s32.totalorder %s12, 1
      %p72 = scmp.ne.s32.totalorder %s67, %s69
      %p73 = scmp.eq.s32.totalorder %s12, 0
      %p74 = por %p72, %p73
      %p75 = scmp.ne.s32.totalorder %s67, %s69
      %p76 = scmp.eq.s32.totalorder %s17, 1
      %p77 = por %p75, %p76
      %p78 = scmp.ne.s32.totalorder %s69, %s70
      %p79 = scmp.eq.s32.totalorder %s17, 0
      %p80 = por %p78, %p79
      %p81 = scmp.ne.s32.totalorder %s69, %s70
      %p82 = scmp.eq.s32.totalorder %s18, 1
      %p83 = por %p81, %p82
      %p85 = scmp.ne.s32.totalorder %s70, %s84
      %p86 = scmp.eq.s32.totalorder %s18, 0
      %p87 = por %p85, %p86
      %s88 = ssub.s32 %s12, %s19
      %p89 = scmp.eq.s32.totalorder %s88, 0
      %s91 = sadd.s32 %s90, 1
      %s92 = scalar_select %p89, %s90, %s91
      %p95 = pneg %p89
      %p96 = scmp.eq.s32.totalorder %s12, 1
      %p97 = por %p95, %p96
      %p98 = scmp.ne.s32.totalorder %s90, %s93
      %p99 = scmp.eq.s32.totalorder %s12, 0
      %p100 = por %p98, %p99
      %p101 = scmp.ne.s32.totalorder %s90, %s93
      %p102 = scmp.eq.s32.totalorder %s17, 1
      %p103 = por %p101, %p102
      %p104 = scmp.ne.s32.totalorder %s93, %s94
      %p105 = scmp.eq.s32.totalorder %s17, 0
      %p106 = por %p104, %p105
      %p107 = scmp.ne.s32.totalorder %s93, %s94
      %p108 = scmp.eq.s32.totalorder %s18, 1
      %p109 = por %p107, %p108
      %p111 = scmp.ne.s32.totalorder %s94, %s110
      %p112 = scmp.eq.s32.totalorder %s18, 0
      %p113 = por %p111, %p112
      %p114 = scmp.le.s32.totalorder 1, %s12
      %p115 = scmp.lt.s32.totalorder %s12, 3
      %p116 = pnand %p114, %p115
      %p117 = pneg %p116
      // Predicated region
      $region9: #{feature_extraction.1} parent=5 // pred_check
        _
      $region10: #{feature_extraction.1} parent=5 // pred_check_branch
        %119 = sbr.rel (%p116) target = $region12
      $region11: #{feature_extraction.1} parent=5 // pred_region
        %s120 = ssub.s32 %s12, 1
        // Predicated region
        $region13: #{feature_extraction.1} parent=11 // pred_check
          %p121 = pneg %p59
        $region14: #{feature_extraction.1} parent=11 // pred_check_branch
          %123 = sbr.rel (%p121) target = $region16
        $region15: #{feature_extraction.1} parent=11 // pred_region
          _
        $region16: #{feature_extraction.1} parent=11 // pred_fallthru
          _
        // Predicated region
        $region17: #{feature_extraction.1} parent=11 // pred_check
          %p124 = pneg %p80
        $region18: #{feature_extraction.1} parent=11 // pred_check_branch
          %126 = sbr.rel (%p124) target = $region20
        $region19: #{feature_extraction.1} parent=11 // pred_region
          _
        $region20: #{feature_extraction.1} parent=11 // pred_fallthru
          _
      $region12: #{feature_extraction.1} parent=5 // pred_fallthru
        _
      %p127 = scmp.lt.s32.totalorder %s12, 2
      // Predicated region
      $region21: #{feature_extraction.1} parent=5 // pred_check
        %p128 = pneg %p127
      $region22: #{feature_extraction.1} parent=5 // pred_check_branch
        %130 = sbr.rel (%p128) target = $region24
      $region23: #{feature_extraction.1} parent=5 // pred_region
        // Predicated region
        $region25: #{feature_extraction.1} parent=23 // pred_check
          %p131 = pneg %p32
        $region26: #{feature_extraction.1} parent=23 // pred_check_branch
          %133 = sbr.rel (%p131) target = $region28
        $region27: #{feature_extraction.1} parent=23 // pred_region
          %p134 = scmp.lt.s32.totalorder %s12, 1
          %s135 = scalar_select %p134, %s12, 1
          %s136 = smul.addr %s135, 32
          %s137 = smul.addr %s136, 8
          %s138 = scalar_lea.vmem %s0, %s137
        $region28: #{feature_extraction.1} parent=23 // pred_fallthru
          _
      $region24: #{feature_extraction.1} parent=5 // pred_fallthru
        _
      %p139 = scmp.le.s32.totalorder 1, %s12
      %p140 = scmp.lt.s32.totalorder %s12, 3
      %p141 = pnand %p139, %p140
      %p142 = pneg %p141
      // Predicated region
      $region29: #{feature_extraction.1} parent=5 // pred_check
        _
      $region30: #{feature_extraction.1} parent=5 // pred_check_branch
        %144 = sbr.rel (%p141) target = $region32
      $region31: #{feature_extraction.1} parent=5 // pred_region
        %s145 = ssub.s32 %s12, 1
        %p146 = scmp.lt.s32.totalorder %s17, 1
        %s147 = scalar_select %p146, %s17, 1
        %s148 = smul.addr %s147, 32
        %s149 = smul.addr %s148, 8
        %s150 = scalar_lea.vmem %s0, %s149
        %p151 = pneg %p38
        %p152 = pneg %p35
        %p153 = pneg %p59
        %p154 = pneg %p56
        %p155 = pneg %p80
        %p156 = pneg %p77
        %p157 = pneg %p106
        %p158 = pneg %p103
        %s159 = sand.u32 %s93, 1
        %s160 = scalar_lea.sflag [#allocation4], %s159
        %s161 = sand.u32 %s93, 1
        %s162 = scalar_lea.vmem [#allocation3], %s161
        %p163 = scmp.lt.s32.totalorder %s17, 1
        %s164 = scalar_select %p163, %s17, 1
        %s165 = smul.addr %s164, 32
        %s166 = smul.addr %s165, 8
        %s167 = scalar_lea.vmem %s0, %s166
        %v168 = vld [vmem:[%s167] sm:$0xff]
        %v169 = vld [vmem:[%s167 + $0x8] sm:$0xff]
        %v170 = vld [vmem:[%s167 + $0x10] sm:$0xff]
        %v171 = vld [vmem:[%s167 + $0x18] sm:$0xff]
        %v172 = vld [vmem:[%s167 + $0x20] sm:$0xff]
        %v173 = vld [vmem:[%s167 + $0x28] sm:$0xff]
        %v174 = vld [vmem:[%s167 + $0x30] sm:$0xff]
        %v175 = vld [vmem:[%s167 + $0x38] sm:$0xff]
        %v176 = vld [vmem:[%s167 + $0x40] sm:$0xff]
        %v177 = vld [vmem:[%s167 + $0x48] sm:$0xff]
        %v178 = vld [vmem:[%s167 + $0x50] sm:$0xff]
        %v179 = vld [vmem:[%s167 + $0x58] sm:$0xff]
        %v180 = vld [vmem:[%s167 + $0x60] sm:$0xff]
        %v181 = vld [vmem:[%s167 + $0x68] sm:$0xff]
        %v182 = vld [vmem:[%s167 + $0x70] sm:$0xff]
        %v183 = vld [vmem:[%s167 + $0x78] sm:$0xff]
        %v184 = vld [vmem:[%s167 + $0x80] sm:$0xff]
        %v185 = vld [vmem:[%s167 + $0x88] sm:$0xff]
        %v186 = vld [vmem:[%s167 + $0x90] sm:$0xff]
        %v187 = vld [vmem:[%s167 + $0x98] sm:$0xff]
        %v188 = vld [vmem:[%s167 + $0xa0] sm:$0xff]
        %v189 = vld [vmem:[%s167 + $0xa8] sm:$0xff]
        %v190 = vld [vmem:[%s167 + $0xb0] sm:$0xff]
        %v191 = vld [vmem:[%s167 + $0xb8] sm:$0xff]
        %v192 = vld [vmem:[%s167 + $0xc0] sm:$0xff]
        %v193 = vld [vmem:[%s167 + $0xc8] sm:$0xff]
        %v194 = vld [vmem:[%s167 + $0xd0] sm:$0xff]
        %v195 = vld [vmem:[%s167 + $0xd8] sm:$0xff]
        %v196 = vld [vmem:[%s167 + $0xe0] sm:$0xff]
        %v197 = vld [vmem:[%s167 + $0xe8] sm:$0xff]
        %v198 = vld [vmem:[%s167 + $0xf0] sm:$0xff]
        %v199 = vld [vmem:[%s167 + $0xf8] sm:$0xff]
        %vm200 = vcmask 516096
        %201 = vst.msk [vmem:[#allocation2 + $0x7] sm:$0x1] %vm200, 0.0
        %vm202 = vcmask 523264
        %203 = vst.msk [vmem:[#allocation2 + $0x8] sm:$0xff] %vm202, %v168
        %204 = vst.msk [vmem:[#allocation2 + $0x10] sm:$0xff] %vm202, %v169
        %205 = vst.msk [vmem:[#allocation2 + $0x18] sm:$0xff] %vm202, %v170
        %206 = vst.msk [vmem:[#allocation2 + $0x20] sm:$0xff] %vm202, %v171
        %207 = vst.msk [vmem:[#allocation2 + $0x28] sm:$0xff] %vm202, %v172
        %208 = vst.msk [vmem:[#allocation2 + $0x30] sm:$0xff] %vm202, %v173
        %209 = vst.msk [vmem:[#allocation2 + $0x38] sm:$0xff] %vm202, %v174
        %210 = vst.msk [vmem:[#allocation2 + $0x40] sm:$0xff] %vm202, %v175
        %211 = vst.msk [vmem:[#allocation2 + $0x48] sm:$0xff] %vm202, %v176
        %212 = vst.msk [vmem:[#allocation2 + $0x50] sm:$0xff] %vm202, %v177
        %213 = vst.msk [vmem:[#allocation2 + $0x58] sm:$0xff] %vm202, %v178
        %214 = vst.msk [vmem:[#allocation2 + $0x60] sm:$0xff] %vm202, %v179
        %215 = vst.msk [vmem:[#allocation2 + $0x68] sm:$0xff] %vm202, %v180
        %216 = vst.msk [vmem:[#allocation2 + $0x70] sm:$0xff] %vm202, %v181
        %217 = vst.msk [vmem:[#allocation2 + $0x78] sm:$0xff] %vm202, %v182
        %218 = vst.msk [vmem:[#allocation2 + $0x80] sm:$0xff] %vm202, %v183
        %219 = vst.msk [vmem:[#allocation2 + $0x88] sm:$0xff] %vm202, %v184
        %220 = vst.msk [vmem:[#allocation2 + $0x90] sm:$0xff] %vm202, %v185
        %221 = vst.msk [vmem:[#allocation2 + $0x98] sm:$0xff] %vm202, %v186
        %222 = vst.msk [vmem:[#allocation2 + $0xa0] sm:$0xff] %vm202, %v187
        %223 = vst.msk [vmem:[#allocation2 + $0xa8] sm:$0xff] %vm202, %v188
        %224 = vst.msk [vmem:[#allocation2 + $0xb0] sm:$0xff] %vm202, %v189
        %225 = vst.msk [vmem:[#allocation2 + $0xb8] sm:$0xff] %vm202, %v190
        %226 = vst.msk [vmem:[#allocation2 + $0xc0] sm:$0xff] %vm202, %v191
        %227 = vst.msk [vmem:[#allocation2 + $0xc8] sm:$0xff] %vm202, %v192
        %228 = vst.msk [vmem:[#allocation2 + $0xd0] sm:$0xff] %vm202, %v193
        %229 = vst.msk [vmem:[#allocation2 + $0xd8] sm:$0xff] %vm202, %v194
        %230 = vst.msk [vmem:[#allocation2 + $0xe0] sm:$0xff] %vm202, %v195
        %231 = vst.msk [vmem:[#allocation2 + $0xe8] sm:$0xff] %vm202, %v196
        %232 = vst.msk [vmem:[#allocation2 + $0xf0] sm:$0xff] %vm202, %v197
        %233 = vst.msk [vmem:[#allocation2 + $0xf8] sm:$0xff] %vm202, %v198
        %234 = vst.msk [vmem:[#allocation2 + $0x100] sm:$0xff] %vm202, %v199
        %235 = vst.msk [vmem:[#allocation2 + $0x108] sm:$0x1] %vm200, 0.0
        %v236 = vld [vmem:[#allocation2 + $0x7] sm:$0xff]
        %v237 = vld [vmem:[#allocation2 + $0xf] sm:$0xff]
        %v238 = vld [vmem:[#allocation2 + $0x17] sm:$0xff]
        %v239 = vld [vmem:[#allocation2 + $0x1f] sm:$0xff]
        %v240 = vld [vmem:[#allocation2 + $0x27] sm:$0xff]
        %v241 = vld [vmem:[#allocation2 + $0x2f] sm:$0xff]
        %v242 = vld [vmem:[#allocation2 + $0x37] sm:$0xff]
        %v243 = vld [vmem:[#allocation2 + $0x3f] sm:$0xff]
        %v244 = vld [vmem:[#allocation2 + $0x47] sm:$0xff]
        %v245 = vld [vmem:[#allocation2 + $0x4f] sm:$0xff]
        %v246 = vld [vmem:[#allocation2 + $0x57] sm:$0xff]
        %v247 = vld [vmem:[#allocation2 + $0x5f] sm:$0xff]
        %v248 = vld [vmem:[#allocation2 + $0x67] sm:$0xff]
        %v249 = vld [vmem:[#allocation2 + $0x6f] sm:$0xff]
        %v250 = vld [vmem:[#allocation2 + $0x77] sm:$0xff]
        %v251 = vld [vmem:[#allocation2 + $0x7f] sm:$0xff]
        %v252 = vld [vmem:[#allocation2 + $0x87] sm:$0xff]
        %v253 = vld [vmem:[#allocation2 + $0x8f] sm:$0xff]
        %v254 = vld [vmem:[#allocation2 + $0x97] sm:$0xff]
        %v255 = vld [vmem:[#allocation2 + $0x9f] sm:$0xff]
        %v256 = vld [vmem:[#allocation2 + $0xa7] sm:$0xff]
        %v257 = vld [vmem:[#allocation2 + $0xaf] sm:$0xff]
        %v258 = vld [vmem:[#allocation2 + $0xb7] sm:$0xff]
        %v259 = vld [vmem:[#allocation2 + $0xbf] sm:$0xff]
        %v260 = vld [vmem:[#allocation2 + $0xc7] sm:$0xff]
        %v261 = vld [vmem:[#allocation2 + $0xcf] sm:$0xff]
        %v262 = vld [vmem:[#allocation2 + $0xd7] sm:$0xff]
        %v263 = vld [vmem:[#allocation2 + $0xdf] sm:$0xff]
        %v264 = vld [vmem:[#allocation2 + $0xe7] sm:$0xff]
        %v265 = vld [vmem:[#allocation2 + $0xef] sm:$0xff]
        %v266 = vld [vmem:[#allocation2 + $0xf7] sm:$0xff]
        %v267 = vld [vmem:[#allocation2 + $0xff] sm:$0xff]
        %v268 = vld [vmem:[#allocation2 + $0x8] sm:$0xff]
        %v269 = vld [vmem:[#allocation2 + $0x10] sm:$0xff]
        %v270 = vld [vmem:[#allocation2 + $0x18] sm:$0xff]
        %v271 = vld [vmem:[#allocation2 + $0x20] sm:$0xff]
        %v272 = vld [vmem:[#allocation2 + $0x28] sm:$0xff]
        %v273 = vld [vmem:[#allocation2 + $0x30] sm:$0xff]
        %v274 = vld [vmem:[#allocation2 + $0x38] sm:$0xff]
        %v275 = vld [vmem:[#allocation2 + $0x40] sm:$0xff]
        %v276 = vld [vmem:[#allocation2 + $0x48] sm:$0xff]
        %v277 = vld [vmem:[#allocation2 + $0x50] sm:$0xff]
        %v278 = vld [vmem:[#allocation2 + $0x58] sm:$0xff]
        %v279 = vld [vmem:[#allocation2 + $0x60] sm:$0xff]
        %v280 = vld [vmem:[#allocation2 + $0x68] sm:$0xff]
        %v281 = vld [vmem:[#allocation2 + $0x70] sm:$0xff]
        %v282 = vld [vmem:[#allocation2 + $0x78] sm:$0xff]
        %v283 = vld [vmem:[#allocation2 + $0x80] sm:$0xff]
        %v284 = vld [vmem:[#allocation2 + $0x88] sm:$0xff]
        %v285 = vld [vmem:[#allocation2 + $0x90] sm:$0xff]
        %v286 = vld [vmem:[#allocation2 + $0x98] sm:$0xff]
        %v287 = vld [vmem:[#allocation2 + $0xa0] sm:$0xff]
        %v288 = vld [vmem:[#allocation2 + $0xa8] sm:$0xff]
        %v289 = vld [vmem:[#allocation2 + $0xb0] sm:$0xff]
        %v290 = vld [vmem:[#allocation2 + $0xb8] sm:$0xff]
        %v291 = vld [vmem:[#allocation2 + $0xc0] sm:$0xff]
        %v292 = vld [vmem:[#allocation2 + $0xc8] sm:$0xff]
        %v293 = vld [vmem:[#allocation2 + $0xd0] sm:$0xff]
        %v294 = vld [vmem:[#allocation2 + $0xd8] sm:$0xff]
        %v295 = vld [vmem:[#allocation2 + $0xe0] sm:$0xff]
        %v296 = vld [vmem:[#allocation2 + $0xe8] sm:$0xff]
        %v297 = vld [vmem:[#allocation2 + $0xf0] sm:$0xff]
        %v298 = vld [vmem:[#allocation2 + $0xf8] sm:$0xff]
        %v299 = vld [vmem:[#allocation2 + $0x100] sm:$0xff]
        %v300 = vld [vmem:[#allocation2 + $0x9] sm:$0xff]
        %v301 = vld [vmem:[#allocation2 + $0x11] sm:$0xff]
        %v302 = vld [vmem:[#allocation2 + $0x19] sm:$0xff]
        %v303 = vld [vmem:[#allocation2 + $0x21] sm:$0xff]
        %v304 = vld [vmem:[#allocation2 + $0x29] sm:$0xff]
        %v305 = vld [vmem:[#allocation2 + $0x31] sm:$0xff]
        %v306 = vld [vmem:[#allocation2 + $0x39] sm:$0xff]
        %v307 = vld [vmem:[#allocation2 + $0x41] sm:$0xff]
        %v308 = vld [vmem:[#allocation2 + $0x49] sm:$0xff]
        %v309 = vld [vmem:[#allocation2 + $0x51] sm:$0xff]
        %v310 = vld [vmem:[#allocation2 + $0x59] sm:$0xff]
        %v311 = vld [vmem:[#allocation2 + $0x61] sm:$0xff]
        %v312 = vld [vmem:[#allocation2 + $0x69] sm:$0xff]
        %v313 = vld [vmem:[#allocation2 + $0x71] sm:$0xff]
        %v314 = vld [vmem:[#allocation2 + $0x79] sm:$0xff]
        %v315 = vld [vmem:[#allocation2 + $0x81] sm:$0xff]
        %v316 = vld [vmem:[#allocation2 + $0x89] sm:$0xff]
        %v317 = vld [vmem:[#allocation2 + $0x91] sm:$0xff]
        %v318 = vld [vmem:[#allocation2 + $0x99] sm:$0xff]
        %v319 = vld [vmem:[#allocation2 + $0xa1] sm:$0xff]
        %v320 = vld [vmem:[#allocation2 + $0xa9] sm:$0xff]
        %v321 = vld [vmem:[#allocation2 + $0xb1] sm:$0xff]
        %v322 = vld [vmem:[#allocation2 + $0xb9] sm:$0xff]
        %v323 = vld [vmem:[#allocation2 + $0xc1] sm:$0xff]
        %v324 = vld [vmem:[#allocation2 + $0xc9] sm:$0xff]
        %v325 = vld [vmem:[#allocation2 + $0xd1] sm:$0xff]
        %v326 = vld [vmem:[#allocation2 + $0xd9] sm:$0xff]
        %v327 = vld [vmem:[#allocation2 + $0xe1] sm:$0xff]
        %v328 = vld [vmem:[#allocation2 + $0xe9] sm:$0xff]
        %v329 = vld [vmem:[#allocation2 + $0xf1] sm:$0xff]
        %v330 = vld [vmem:[#allocation2 + $0xf9] sm:$0xff]
        %v331 = vld [vmem:[#allocation2 + $0x101] sm:$0xff]
        %364 = vrot.lane.b32.xlu0 %v268, 64
        %v365 = vpop.permute.xlu0 %364
        %366 = vrot.lane.b32.xlu0 %v269, 64
        %v367 = vpop.permute.xlu0 %366
        %368 = vrot.lane.b32.xlu0 %v270, 64
        %v369 = vpop.permute.xlu0 %368
        %370 = vrot.lane.b32.xlu0 %v271, 64
        %v371 = vpop.permute.xlu0 %370
        %372 = vrot.lane.b32.xlu0 %v272, 64
        %v373 = vpop.permute.xlu0 %372
        %374 = vrot.lane.b32.xlu0 %v273, 64
        %v375 = vpop.permute.xlu0 %374
        %376 = vrot.lane.b32.xlu0 %v274, 64
        %v377 = vpop.permute.xlu0 %376
        %378 = vrot.lane.b32.xlu0 %v275, 64
        %v379 = vpop.permute.xlu0 %378
        %380 = vrot.lane.b32.xlu0 %v276, 64
        %v381 = vpop.permute.xlu0 %380
        %382 = vrot.lane.b32.xlu0 %v277, 64
        %v383 = vpop.permute.xlu0 %382
        %384 = vrot.lane.b32.xlu0 %v278, 64
        %v385 = vpop.permute.xlu0 %384
        %386 = vrot.lane.b32.xlu0 %v279, 64
        %v387 = vpop.permute.xlu0 %386
        %388 = vrot.lane.b32.xlu0 %v280, 64
        %v389 = vpop.permute.xlu0 %388
        %390 = vrot.lane.b32.xlu0 %v281, 64
        %v391 = vpop.permute.xlu0 %390
        %392 = vrot.lane.b32.xlu0 %v282, 64
        %v393 = vpop.permute.xlu0 %392
        %394 = vrot.lane.b32.xlu0 %v283, 64
        %v395 = vpop.permute.xlu0 %394
        %396 = vrot.lane.b32.xlu0 %v284, 64
        %v397 = vpop.permute.xlu0 %396
        %398 = vrot.lane.b32.xlu0 %v285, 64
        %v399 = vpop.permute.xlu0 %398
        %400 = vrot.lane.b32.xlu0 %v286, 64
        %v401 = vpop.permute.xlu0 %400
        %402 = vrot.lane.b32.xlu0 %v287, 64
        %v403 = vpop.permute.xlu0 %402
        %404 = vrot.lane.b32.xlu0 %v288, 64
        %v405 = vpop.permute.xlu0 %404
        %406 = vrot.lane.b32.xlu0 %v289, 64
        %v407 = vpop.permute.xlu0 %406
        %408 = vrot.lane.b32.xlu0 %v290, 64
        %v409 = vpop.permute.xlu0 %408
        %410 = vrot.lane.b32.xlu0 %v291, 64
        %v411 = vpop.permute.xlu0 %410
        %412 = vrot.lane.b32.xlu0 %v292, 64
        %v413 = vpop.permute.xlu0 %412
        %414 = vrot.lane.b32.xlu0 %v293, 64
        %v415 = vpop.permute.xlu0 %414
        %416 = vrot.lane.b32.xlu0 %v294, 64
        %v417 = vpop.permute.xlu0 %416
        %418 = vrot.lane.b32.xlu0 %v295, 64
        %v419 = vpop.permute.xlu0 %418
        %420 = vrot.lane.b32.xlu0 %v296, 64
        %v421 = vpop.permute.xlu0 %420
        %422 = vrot.lane.b32.xlu0 %v297, 64
        %v423 = vpop.permute.xlu0 %422
        %424 = vrot.lane.b32.xlu0 %v298, 64
        %v425 = vpop.permute.xlu0 %424
        %426 = vrot.lane.b32.xlu0 %v299, 64
        %v427 = vpop.permute.xlu0 %426
        %v460 = vsel %vm202, %v236, %v365
        %v461 = vsel %vm202, %v237, %v367
        %v462 = vsel %vm202, %v238, %v369
        %v463 = vsel %vm202, %v239, %v371
        %v464 = vsel %vm202, %v240, %v373
        %v465 = vsel %vm202, %v241, %v375
        %v466 = vsel %vm202, %v242, %v377
        %v467 = vsel %vm202, %v243, %v379
        %v468 = vsel %vm202, %v244, %v381
        %v469 = vsel %vm202, %v245, %v383
        %v470 = vsel %vm202, %v246, %v385
        %v471 = vsel %vm202, %v247, %v387
        %v472 = vsel %vm202, %v248, %v389
        %v473 = vsel %vm202, %v249, %v391
        %v474 = vsel %vm202, %v250, %v393
        %v475 = vsel %vm202, %v251, %v395
        %v476 = vsel %vm202, %v252, %v397
        %v477 = vsel %vm202, %v253, %v399
        %v478 = vsel %vm202, %v254, %v401
        %v479 = vsel %vm202, %v255, %v403
        %v480 = vsel %vm202, %v256, %v405
        %v481 = vsel %vm202, %v257, %v407
        %v482 = vsel %vm202, %v258, %v409
        %v483 = vsel %vm202, %v259, %v411
        %v484 = vsel %vm202, %v260, %v413
        %v485 = vsel %vm202, %v261, %v415
        %v486 = vsel %vm202, %v262, %v417
        %v487 = vsel %vm202, %v263, %v419
        %v488 = vsel %vm202, %v264, %v421
        %v489 = vsel %vm202, %v265, %v423
        %v490 = vsel %vm202, %v266, %v425
        %v491 = vsel %vm202, %v267, %v427
        %v492 = vld [vmem:[%s1] sm:$0xff]
        %v493 = vld [vmem:[%s1 + $0x8] sm:$0xff]
        %v494 = vld [vmem:[%s1 + $0x10] sm:$0xff]
        %v495 = vld [vmem:[%s1 + $0x18] sm:$0xff]
        %v496 = vld [vmem:[%s1 + $0x20] sm:$0xff]
        %v497 = vld [vmem:[%s1 + $0x28] sm:$0xff]
        %v498 = vld [vmem:[%s1 + $0x30] sm:$0xff]
        %v499 = vld [vmem:[%s1 + $0x38] sm:$0xff]
        %v500 = vld [vmem:[%s1 + $0x40] sm:$0xff]
        %v501 = vld [vmem:[%s1 + $0x48] sm:$0xff]
        %v502 = vld [vmem:[%s1 + $0x50] sm:$0xff]
        %v503 = vld [vmem:[%s1 + $0x58] sm:$0xff]
        %v504 = vld [vmem:[%s1 + $0x60] sm:$0xff]
        %v505 = vld [vmem:[%s1 + $0x68] sm:$0xff]
        %v506 = vld [vmem:[%s1 + $0x70] sm:$0xff]
        %v507 = vld [vmem:[%s1 + $0x78] sm:$0xff]
        %v508 = vld [vmem:[%s1 + $0x80] sm:$0xff]
        %v509 = vld [vmem:[%s1 + $0x88] sm:$0xff]
        %v510 = vld [vmem:[%s1 + $0x90] sm:$0xff]
        %v511 = vld [vmem:[%s1 + $0x98] sm:$0xff]
        %v512 = vld [vmem:[%s1 + $0xa0] sm:$0xff]
        %v513 = vld [vmem:[%s1 + $0xa8] sm:$0xff]
        %v514 = vld [vmem:[%s1 + $0xb0] sm:$0xff]
        %v515 = vld [vmem:[%s1 + $0xb8] sm:$0xff]
        %v516 = vld [vmem:[%s2] sm:$0x1]
        %v518 = vperm.slane %v516, 0
        %v521 = vsel %vm202, %v300, 0
        %v524 = vsel %vm202, %v301, 0
        %v527 = vsel %vm202, %v302, 0
        %v530 = vsel %vm202, %v303, 0
        %v533 = vsel %vm202, %v304, 0
        %v536 = vsel %vm202, %v305, 0
        %v539 = vsel %vm202, %v306, 0
        %v542 = vsel %vm202, %v307, 0
        %v545 = vsel %vm202, %v308, 0
        %v548 = vsel %vm202, %v309, 0
        %v551 = vsel %vm202, %v310, 0
        %v554 = vsel %vm202, %v311, 0
        %v557 = vsel %vm202, %v312, 0
        %v560 = vsel %vm202, %v313, 0
        %v563 = vsel %vm202, %v314, 0
        %v566 = vsel %vm202, %v315, 0
        %v569 = vsel %vm202, %v316, 0
        %v572 = vsel %vm202, %v317, 0
        %v575 = vsel %vm202, %v318, 0
        %v578 = vsel %vm202, %v319, 0
        %v581 = vsel %vm202, %v320, 0
        %v584 = vsel %vm202, %v321, 0
        %v587 = vsel %vm202, %v322, 0
        %v590 = vsel %vm202, %v323, 0
        %v593 = vsel %vm202, %v324, 0
        %v596 = vsel %vm202, %v325, 0
        %v599 = vsel %vm202, %v326, 0
        %v602 = vsel %vm202, %v327, 0
        %v605 = vsel %vm202, %v328, 0
        %v608 = vsel %vm202, %v329, 0
        %v611 = vsel %vm202, %v330, 0
        %v614 = vsel %vm202, %v331, 0
        %616 = vmatpush.msra.mxu0 %v507
        %617 = vmatpush.msra.mxu0 %v506
        %618 = vmatpush.msra.mxu0 %v505
        %619 = vmatpush.msra.mxu0 %v504
        %620 = vmatpush.msra.mxu0 %v503
        %621 = vmatpush.msra.mxu0 %v502
        %622 = vmatpush.msra.mxu0 %v501
        %623 = vmatpush.msra.mxu0 %v500
        %624 = vmatpush.msra.mxu0 %v499
        %625 = vmatpush.msra.mxu0 %v498
        %626 = vmatpush.msra.mxu0 %v497
        %627 = vmatpush.msra.mxu0 %v496
        %628 = vmatpush.msra.mxu0 %v495
        %629 = vmatpush.msra.mxu0 %v494
        %630 = vmatpush.msra.mxu0 %v493
        %631 = vmatpush.msra.mxu0 %v492
        %632 = vmatmul.f32.gmra.mxu0 %v460
        %v633 = vpop.f32.mrf.mxu0
        %v634 = vadd.f32 %v518, %v633
        %635 = vmatmul.f32.gmra.mxu0 %v461
        %v636 = vpop.f32.mrf.mxu0
        %v637 = vadd.f32 %v518, %v636
        %638 = vmatmul.f32.gmra.mxu0 %v462
        %v639 = vpop.f32.mrf.mxu0
        %v640 = vadd.f32 %v518, %v639
        %641 = vmatmul.f32.gmra.mxu0 %v463
        %v642 = vpop.f32.mrf.mxu0
        %v643 = vadd.f32 %v518, %v642
        %644 = vmatmul.f32.gmra.mxu0 %v464
        %v645 = vpop.f32.mrf.mxu0
        %v646 = vadd.f32 %v518, %v645
        %647 = vmatmul.f32.gmra.mxu0 %v465
        %v648 = vpop.f32.mrf.mxu0
        %v649 = vadd.f32 %v518, %v648
        %650 = vmatmul.f32.gmra.mxu0 %v466
        %v651 = vpop.f32.mrf.mxu0
        %v652 = vadd.f32 %v518, %v651
        %653 = vmatmul.f32.gmra.mxu0 %v467
        %v654 = vpop.f32.mrf.mxu0
        %v655 = vadd.f32 %v518, %v654
        %656 = vmatmul.f32.gmra.mxu0 %v468
        %v657 = vpop.f32.mrf.mxu0
        %v658 = vadd.f32 %v518, %v657
        %659 = vmatmul.f32.gmra.mxu0 %v469
        %v660 = vpop.f32.mrf.mxu0
        %v661 = vadd.f32 %v518, %v660
        %662 = vmatmul.f32.gmra.mxu0 %v470
        %v663 = vpop.f32.mrf.mxu0
        %v664 = vadd.f32 %v518, %v663
        %665 = vmatmul.f32.gmra.mxu0 %v471
        %v666 = vpop.f32.mrf.mxu0
        %v667 = vadd.f32 %v518, %v666
        %668 = vmatmul.f32.gmra.mxu0 %v472
        %v669 = vpop.f32.mrf.mxu0
        %v670 = vadd.f32 %v518, %v669
        %671 = vmatmul.f32.gmra.mxu0 %v473
        %v672 = vpop.f32.mrf.mxu0
        %v673 = vadd.f32 %v518, %v672
        %674 = vmatmul.f32.gmra.mxu0 %v474
        %v675 = vpop.f32.mrf.mxu0
        %v676 = vadd.f32 %v518, %v675
        %677 = vmatmul.f32.gmra.mxu0 %v475
        %v678 = vpop.f32.mrf.mxu0
        %v679 = vadd.f32 %v518, %v678
        %680 = vmatmul.f32.gmra.mxu0 %v476
        %v681 = vpop.f32.mrf.mxu0
        %v682 = vadd.f32 %v518, %v681
        %683 = vmatmul.f32.gmra.mxu0 %v477
        %v684 = vpop.f32.mrf.mxu0
        %v685 = vadd.f32 %v518, %v684
        %686 = vmatmul.f32.gmra.mxu0 %v478
        %v687 = vpop.f32.mrf.mxu0
        %v688 = vadd.f32 %v518, %v687
        %689 = vmatmul.f32.gmra.mxu0 %v479
        %v690 = vpop.f32.mrf.mxu0
        %v691 = vadd.f32 %v518, %v690
        %692 = vmatmul.f32.gmra.mxu0 %v480
        %v693 = vpop.f32.mrf.mxu0
        %v694 = vadd.f32 %v518, %v693
        %695 = vmatmul.f32.gmra.mxu0 %v481
        %v696 = vpop.f32.mrf.mxu0
        %v697 = vadd.f32 %v518, %v696
        %698 = vmatmul.f32.gmra.mxu0 %v482
        %v699 = vpop.f32.mrf.mxu0
        %v700 = vadd.f32 %v518, %v699
        %701 = vmatmul.f32.gmra.mxu0 %v483
        %v702 = vpop.f32.mrf.mxu0
        %v703 = vadd.f32 %v518, %v702
        %704 = vmatmul.f32.gmra.mxu0 %v484
        %v705 = vpop.f32.mrf.mxu0
        %v706 = vadd.f32 %v518, %v705
        %707 = vmatmul.f32.gmra.mxu0 %v485
        %v708 = vpop.f32.mrf.mxu0
        %v709 = vadd.f32 %v518, %v708
        %710 = vmatmul.f32.gmra.mxu0 %v486
        %v711 = vpop.f32.mrf.mxu0
        %v712 = vadd.f32 %v518, %v711
        %713 = vmatmul.f32.gmra.mxu0 %v487
        %v714 = vpop.f32.mrf.mxu0
        %v715 = vadd.f32 %v518, %v714
        %716 = vmatmul.f32.gmra.mxu0 %v488
        %v717 = vpop.f32.mrf.mxu0
        %v718 = vadd.f32 %v518, %v717
        %719 = vmatmul.f32.gmra.mxu0 %v489
        %v720 = vpop.f32.mrf.mxu0
        %v721 = vadd.f32 %v518, %v720
        %722 = vmatmul.f32.gmra.mxu0 %v490
        %v723 = vpop.f32.mrf.mxu0
        %v724 = vadd.f32 %v518, %v723
        %725 = vmatmul.f32.gmra.mxu0 %v491
        %v726 = vpop.f32.mrf.mxu0
        %v727 = vadd.f32 %v518, %v726
        %728 = vdwg.mxu0
        %729 = vmatpush.msra.mxu0 0.0
        %730 = vmatpush.msra.mxu0 0.0
        %731 = vmatpush.msra.mxu0 0.0
        %732 = vmatpush.msra.mxu0 0.0
        %733 = vmatpush.msra.mxu0 0.0
        %734 = vmatpush.msra.mxu0 0.0
        %735 = vmatpush.msra.mxu0 0.0
        %736 = vmatpush.msra.mxu0 0.0
        %737 = vmatpush.msra.mxu0 %v515
        %738 = vmatpush.msra.mxu0 %v514
        %739 = vmatpush.msra.mxu0 %v513
        %740 = vmatpush.msra.mxu0 %v512
        %741 = vmatpush.msra.mxu0 %v511
        %742 = vmatpush.msra.mxu0 %v510
        %743 = vmatpush.msra.mxu0 %v509
        %744 = vmatpush.msra.mxu0 %v508
        %745 = vmatmul.f32.gmra.mxu0 %v521
        %v746 = vpop.f32.mrf.mxu0
        %v747 = vadd.f32 %v634, %v746
        %748 = vmatmul.f32.gmra.mxu0 %v524
        %v749 = vpop.f32.mrf.mxu0
        %v750 = vadd.f32 %v637, %v749
        %751 = vmatmul.f32.gmra.mxu0 %v527
        %v752 = vpop.f32.mrf.mxu0
        %v753 = vadd.f32 %v640, %v752
        %754 = vmatmul.f32.gmra.mxu0 %v530
        %v755 = vpop.f32.mrf.mxu0
        %v756 = vadd.f32 %v643, %v755
        %757 = vmatmul.f32.gmra.mxu0 %v533
        %v758 = vpop.f32.mrf.mxu0
        %v759 = vadd.f32 %v646, %v758
        %760 = vmatmul.f32.gmra.mxu0 %v536
        %v761 = vpop.f32.mrf.mxu0
        %v762 = vadd.f32 %v649, %v761
        %763 = vmatmul.f32.gmra.mxu0 %v539
        %v764 = vpop.f32.mrf.mxu0
        %v765 = vadd.f32 %v652, %v764
        %766 = vmatmul.f32.gmra.mxu0 %v542
        %v767 = vpop.f32.mrf.mxu0
        %v768 = vadd.f32 %v655, %v767
        %769 = vmatmul.f32.gmra.mxu0 %v545
        %v770 = vpop.f32.mrf.mxu0
        %v771 = vadd.f32 %v658, %v770
        %772 = vmatmul.f32.gmra.mxu0 %v548
        %v773 = vpop.f32.mrf.mxu0
        %v774 = vadd.f32 %v661, %v773
        %775 = vmatmul.f32.gmra.mxu0 %v551
        %v776 = vpop.f32.mrf.mxu0
        %v777 = vadd.f32 %v664, %v776
        %778 = vmatmul.f32.gmra.mxu0 %v554
        %v779 = vpop.f32.mrf.mxu0
        %v780 = vadd.f32 %v667, %v779
        %781 = vmatmul.f32.gmra.mxu0 %v557
        %v782 = vpop.f32.mrf.mxu0
        %v783 = vadd.f32 %v670, %v782
        %784 = vmatmul.f32.gmra.mxu0 %v560
        %v785 = vpop.f32.mrf.mxu0
        %v786 = vadd.f32 %v673, %v785
        %787 = vmatmul.f32.gmra.mxu0 %v563
        %v788 = vpop.f32.mrf.mxu0
        %v789 = vadd.f32 %v676, %v788
        %790 = vmatmul.f32.gmra.mxu0 %v566
        %v791 = vpop.f32.mrf.mxu0
        %v792 = vadd.f32 %v679, %v791
        %793 = vmatmul.f32.gmra.mxu0 %v569
        %v794 = vpop.f32.mrf.mxu0
        %v795 = vadd.f32 %v682, %v794
        %796 = vmatmul.f32.gmra.mxu0 %v572
        %v797 = vpop.f32.mrf.mxu0
        %v798 = vadd.f32 %v685, %v797
        %799 = vmatmul.f32.gmra.mxu0 %v575
        %v800 = vpop.f32.mrf.mxu0
        %v801 = vadd.f32 %v688, %v800
        %802 = vmatmul.f32.gmra.mxu0 %v578
        %v803 = vpop.f32.mrf.mxu0
        %v804 = vadd.f32 %v691, %v803
        %805 = vmatmul.f32.gmra.mxu0 %v581
        %v806 = vpop.f32.mrf.mxu0
        %v807 = vadd.f32 %v694, %v806
        %808 = vmatmul.f32.gmra.mxu0 %v584
        %v809 = vpop.f32.mrf.mxu0
        %v810 = vadd.f32 %v697, %v809
        %811 = vmatmul.f32.gmra.mxu0 %v587
        %v812 = vpop.f32.mrf.mxu0
        %v813 = vadd.f32 %v700, %v812
        %814 = vmatmul.f32.gmra.mxu0 %v590
        %v815 = vpop.f32.mrf.mxu0
        %v816 = vadd.f32 %v703, %v815
        %817 = vmatmul.f32.gmra.mxu0 %v593
        %v818 = vpop.f32.mrf.mxu0
        %v819 = vadd.f32 %v706, %v818
        %820 = vmatmul.f32.gmra.mxu0 %v596
        %v821 = vpop.f32.mrf.mxu0
        %v822 = vadd.f32 %v709, %v821
        %823 = vmatmul.f32.gmra.mxu0 %v599
        %v824 = vpop.f32.mrf.mxu0
        %v825 = vadd.f32 %v712, %v824
        %826 = vmatmul.f32.gmra.mxu0 %v602
        %v827 = vpop.f32.mrf.mxu0
        %v828 = vadd.f32 %v715, %v827
        %829 = vmatmul.f32.gmra.mxu0 %v605
        %v830 = vpop.f32.mrf.mxu0
        %v831 = vadd.f32 %v718, %v830
        %832 = vmatmul.f32.gmra.mxu0 %v608
        %v833 = vpop.f32.mrf.mxu0
        %v834 = vadd.f32 %v721, %v833
        %835 = vmatmul.f32.gmra.mxu0 %v611
        %v836 = vpop.f32.mrf.mxu0
        %v837 = vadd.f32 %v724, %v836
        %838 = vmatmul.f32.gmra.mxu0 %v614
        %v839 = vpop.f32.mrf.mxu0
        %v840 = vadd.f32 %v727, %v839
        %841 = vdwg.mxu0
        %v842 = vmax.f32 %v747, 0.0
        %v843 = vmax.f32 %v750, 0.0
        %v844 = vmax.f32 %v753, 0.0
        %v845 = vmax.f32 %v756, 0.0
        %v846 = vmax.f32 %v759, 0.0
        %v847 = vmax.f32 %v762, 0.0
        %v848 = vmax.f32 %v765, 0.0
        %v849 = vmax.f32 %v768, 0.0
        %v850 = vmax.f32 %v771, 0.0
        %v851 = vmax.f32 %v774, 0.0
        %v852 = vmax.f32 %v777, 0.0
        %v853 = vmax.f32 %v780, 0.0
        %v854 = vmax.f32 %v783, 0.0
        %v855 = vmax.f32 %v786, 0.0
        %v856 = vmax.f32 %v789, 0.0
        %v857 = vmax.f32 %v792, 0.0
        %v858 = vmax.f32 %v795, 0.0
        %v859 = vmax.f32 %v798, 0.0
        %v860 = vmax.f32 %v801, 0.0
        %v861 = vmax.f32 %v804, 0.0
        %v862 = vmax.f32 %v807, 0.0
        %v863 = vmax.f32 %v810, 0.0
        %v864 = vmax.f32 %v813, 0.0
        %v865 = vmax.f32 %v816, 0.0
        %v866 = vmax.f32 %v819, 0.0
        %v867 = vmax.f32 %v822, 0.0
        %v868 = vmax.f32 %v825, 0.0
        %v869 = vmax.f32 %v828, 0.0
        %v870 = vmax.f32 %v831, 0.0
        %v871 = vmax.f32 %v834, 0.0
        %v872 = vmax.f32 %v837, 0.0
        %v873 = vmax.f32 %v840, 0.0
        %874 = vst.msk [vmem:[#allocation2 + $0x7] sm:$0x1] %vm200, 0.0
        %875 = vst.msk [vmem:[#allocation2 + $0x8] sm:$0xff] %vm202, %v842
        %876 = vst.msk [vmem:[#allocation2 + $0x10] sm:$0xff] %vm202, %v843
        %877 = vst.msk [vmem:[#allocation2 + $0x18] sm:$0xff] %vm202, %v844
        %878 = vst.msk [vmem:[#allocation2 + $0x20] sm:$0xff] %vm202, %v845
        %879 = vst.msk [vmem:[#allocation2 + $0x28] sm:$0xff] %vm202, %v846
        %880 = vst.msk [vmem:[#allocation2 + $0x30] sm:$0xff] %vm202, %v847
        %881 = vst.msk [vmem:[#allocation2 + $0x38] sm:$0xff] %vm202, %v848
        %882 = vst.msk [vmem:[#allocation2 + $0x40] sm:$0xff] %vm202, %v849
        %883 = vst.msk [vmem:[#allocation2 + $0x48] sm:$0xff] %vm202, %v850
        %884 = vst.msk [vmem:[#allocation2 + $0x50] sm:$0xff] %vm202, %v851
        %885 = vst.msk [vmem:[#allocation2 + $0x58] sm:$0xff] %vm202, %v852
        %886 = vst.msk [vmem:[#allocation2 + $0x60] sm:$0xff] %vm202, %v853
        %887 = vst.msk [vmem:[#allocation2 + $0x68] sm:$0xff] %vm202, %v854
        %888 = vst.msk [vmem:[#allocation2 + $0x70] sm:$0xff] %vm202, %v855
        %889 = vst.msk [vmem:[#allocation2 + $0x78] sm:$0xff] %vm202, %v856
        %890 = vst.msk [vmem:[#allocation2 + $0x80] sm:$0xff] %vm202, %v857
        %891 = vst.msk [vmem:[#allocation2 + $0x88] sm:$0xff] %vm202, %v858
        %892 = vst.msk [vmem:[#allocation2 + $0x90] sm:$0xff] %vm202, %v859
        %893 = vst.msk [vmem:[#allocation2 + $0x98] sm:$0xff] %vm202, %v860
        %894 = vst.msk [vmem:[#allocation2 + $0xa0] sm:$0xff] %vm202, %v861
        %895 = vst.msk [vmem:[#allocation2 + $0xa8] sm:$0xff] %vm202, %v862
        %896 = vst.msk [vmem:[#allocation2 + $0xb0] sm:$0xff] %vm202, %v863
        %897 = vst.msk [vmem:[#allocation2 + $0xb8] sm:$0xff] %vm202, %v864
        %898 = vst.msk [vmem:[#allocation2 + $0xc0] sm:$0xff] %vm202, %v865
        %899 = vst.msk [vmem:[#allocation2 + $0xc8] sm:$0xff] %vm202, %v866
        %900 = vst.msk [vmem:[#allocation2 + $0xd0] sm:$0xff] %vm202, %v867
        %901 = vst.msk [vmem:[#allocation2 + $0xd8] sm:$0xff] %vm202, %v868
        %902 = vst.msk [vmem:[#allocation2 + $0xe0] sm:$0xff] %vm202, %v869
        %903 = vst.msk [vmem:[#allocation2 + $0xe8] sm:$0xff] %vm202, %v870
        %904 = vst.msk [vmem:[#allocation2 + $0xf0] sm:$0xff] %vm202, %v871
        %905 = vst.msk [vmem:[#allocation2 + $0xf8] sm:$0xff] %vm202, %v872
        %906 = vst.msk [vmem:[#allocation2 + $0x100] sm:$0xff] %vm202, %v873
        %907 = vst.msk [vmem:[#allocation2 + $0x108] sm:$0x1] %vm200, 0.0
        %s908 = scalar_lea.vmem [#allocation2], 7
        %v909 = vld [vmem:[%s908] ss:$2 sm:$0xff]
        %s910 = scalar_lea.vmem [#allocation2], 23
        %v911 = vld [vmem:[%s910] ss:$2 sm:$0xff]
        %s912 = scalar_lea.vmem [#allocation2], 39
        %v913 = vld [vmem:[%s912] ss:$2 sm:$0xff]
        %s914 = scalar_lea.vmem [#allocation2], 55
        %v915 = vld [vmem:[%s914] ss:$2 sm:$0xff]
        %s916 = scalar_lea.vmem [#allocation2], 71
        %v917 = vld [vmem:[%s916] ss:$2 sm:$0xff]
        %s918 = scalar_lea.vmem [#allocation2], 87
        %v919 = vld [vmem:[%s918] ss:$2 sm:$0xff]
        %s920 = scalar_lea.vmem [#allocation2], 103
        %v921 = vld [vmem:[%s920] ss:$2 sm:$0xff]
        %s922 = scalar_lea.vmem [#allocation2], 119
        %v923 = vld [vmem:[%s922] ss:$2 sm:$0xff]
        %s924 = scalar_lea.vmem [#allocation2], 135
        %v925 = vld [vmem:[%s924] ss:$2 sm:$0xff]
        %s926 = scalar_lea.vmem [#allocation2], 151
        %v927 = vld [vmem:[%s926] ss:$2 sm:$0xff]
        %s928 = scalar_lea.vmem [#allocation2], 167
        %v929 = vld [vmem:[%s928] ss:$2 sm:$0xff]
        %s930 = scalar_lea.vmem [#allocation2], 183
        %v931 = vld [vmem:[%s930] ss:$2 sm:$0xff]
        %s932 = scalar_lea.vmem [#allocation2], 199
        %v933 = vld [vmem:[%s932] ss:$2 sm:$0xff]
        %s934 = scalar_lea.vmem [#allocation2], 215
        %v935 = vld [vmem:[%s934] ss:$2 sm:$0xff]
        %s936 = scalar_lea.vmem [#allocation2], 231
        %v937 = vld [vmem:[%s936] ss:$2 sm:$0xff]
        %s938 = scalar_lea.vmem [#allocation2], 247
        %v939 = vld [vmem:[%s938] ss:$2 sm:$0xff]
        %s940 = scalar_lea.vmem [#allocation2], 8
        %v941 = vld [vmem:[%s940] ss:$2 sm:$0xff]
        %s942 = scalar_lea.vmem [#allocation2], 24
        %v943 = vld [vmem:[%s942] ss:$2 sm:$0xff]
        %s944 = scalar_lea.vmem [#allocation2], 40
        %v945 = vld [vmem:[%s944] ss:$2 sm:$0xff]
        %s946 = scalar_lea.vmem [#allocation2], 56
        %v947 = vld [vmem:[%s946] ss:$2 sm:$0xff]
        %s948 = scalar_lea.vmem [#allocation2], 72
        %v949 = vld [vmem:[%s948] ss:$2 sm:$0xff]
        %s950 = scalar_lea.vmem [#allocation2], 88
        %v951 = vld [vmem:[%s950] ss:$2 sm:$0xff]
        %s952 = scalar_lea.vmem [#allocation2], 104
        %v953 = vld [vmem:[%s952] ss:$2 sm:$0xff]
        %s954 = scalar_lea.vmem [#allocation2], 120
        %v955 = vld [vmem:[%s954] ss:$2 sm:$0xff]
        %s956 = scalar_lea.vmem [#allocation2], 136
        %v957 = vld [vmem:[%s956] ss:$2 sm:$0xff]
        %s958 = scalar_lea.vmem [#allocation2], 152
        %v959 = vld [vmem:[%s958] ss:$2 sm:$0xff]
        %s960 = scalar_lea.vmem [#allocation2], 168
        %v961 = vld [vmem:[%s960] ss:$2 sm:$0xff]
        %s962 = scalar_lea.vmem [#allocation2], 184
        %v963 = vld [vmem:[%s962] ss:$2 sm:$0xff]
        %s964 = scalar_lea.vmem [#allocation2], 200
        %v965 = vld [vmem:[%s964] ss:$2 sm:$0xff]
        %s966 = scalar_lea.vmem [#allocation2], 216
        %v967 = vld [vmem:[%s966] ss:$2 sm:$0xff]
        %s968 = scalar_lea.vmem [#allocation2], 232
        %v969 = vld [vmem:[%s968] ss:$2 sm:$0xff]
        %s970 = scalar_lea.vmem [#allocation2], 248
        %v971 = vld [vmem:[%s970] ss:$2 sm:$0xff]
        %v972 = vmax.f32 %v909, %v941
        %v973 = vmax.f32 %v911, %v943
        %v974 = vmax.f32 %v913, %v945
        %v975 = vmax.f32 %v915, %v947
        %v976 = vmax.f32 %v917, %v949
        %v977 = vmax.f32 %v919, %v951
        %v978 = vmax.f32 %v921, %v953
        %v979 = vmax.f32 %v923, %v955
        %v980 = vmax.f32 %v925, %v957
        %v981 = vmax.f32 %v927, %v959
        %v982 = vmax.f32 %v929, %v961
        %v983 = vmax.f32 %v931, %v963
        %v984 = vmax.f32 %v933, %v965
        %v985 = vmax.f32 %v935, %v967
        %v986 = vmax.f32 %v937, %v969
        %v987 = vmax.f32 %v939, %v971
        %s988 = scalar_lea.vmem [#allocation2], 9
        %v989 = vld [vmem:[%s988] ss:$2 sm:$0xff]
        %s990 = scalar_lea.vmem [#allocation2], 25
        %v991 = vld [vmem:[%s990] ss:$2 sm:$0xff]
        %s992 = scalar_lea.vmem [#allocation2], 41
        %v993 = vld [vmem:[%s992] ss:$2 sm:$0xff]
        %s994 = scalar_lea.vmem [#allocation2], 57
        %v995 = vld [vmem:[%s994] ss:$2 sm:$0xff]
        %s996 = scalar_lea.vmem [#allocation2], 73
        %v997 = vld [vmem:[%s996] ss:$2 sm:$0xff]
        %s998 = scalar_lea.vmem [#allocation2], 89
        %v999 = vld [vmem:[%s998] ss:$2 sm:$0xff]
        %s1000 = scalar_lea.vmem [#allocation2], 105
        %v1001 = vld [vmem:[%s1000] ss:$2 sm:$0xff]
        %s1002 = scalar_lea.vmem [#allocation2], 121
        %v1003 = vld [vmem:[%s1002] ss:$2 sm:$0xff]
        %s1004 = scalar_lea.vmem [#allocation2], 137
        %v1005 = vld [vmem:[%s1004] ss:$2 sm:$0xff]
        %s1006 = scalar_lea.vmem [#allocation2], 153
        %v1007 = vld [vmem:[%s1006] ss:$2 sm:$0xff]
        %s1008 = scalar_lea.vmem [#allocation2], 169
        %v1009 = vld [vmem:[%s1008] ss:$2 sm:$0xff]
        %s1010 = scalar_lea.vmem [#allocation2], 185
        %v1011 = vld [vmem:[%s1010] ss:$2 sm:$0xff]
        %s1012 = scalar_lea.vmem [#allocation2], 201
        %v1013 = vld [vmem:[%s1012] ss:$2 sm:$0xff]
        %s1014 = scalar_lea.vmem [#allocation2], 217
        %v1015 = vld [vmem:[%s1014] ss:$2 sm:$0xff]
        %s1016 = scalar_lea.vmem [#allocation2], 233
        %v1017 = vld [vmem:[%s1016] ss:$2 sm:$0xff]
        %s1018 = scalar_lea.vmem [#allocation2], 249
        %v1019 = vld [vmem:[%s1018] ss:$2 sm:$0xff]
        %v1020 = vmax.f32 %v972, %v989
        %v1021 = vmax.f32 %v973, %v991
        %v1022 = vmax.f32 %v974, %v993
        %v1023 = vmax.f32 %v975, %v995
        %v1024 = vmax.f32 %v976, %v997
        %v1025 = vmax.f32 %v977, %v999
        %v1026 = vmax.f32 %v978, %v1001
        %v1027 = vmax.f32 %v979, %v1003
        %v1028 = vmax.f32 %v980, %v1005
        %v1029 = vmax.f32 %v981, %v1007
        %v1030 = vmax.f32 %v982, %v1009
        %v1031 = vmax.f32 %v983, %v1011
        %v1032 = vmax.f32 %v984, %v1013
        %v1033 = vmax.f32 %v985, %v1015
        %v1034 = vmax.f32 %v986, %v1017
        %v1035 = vmax.f32 %v987, %v1019
        %1036 = vst.msk [vmem:[#allocation2 + $0x7] sm:$0x1] %vm200, 0.0
        %1037 = vst.msk [vmem:[#allocation2 + $0x8] sm:$0xff] %vm202, %v1020
        %1038 = vst.msk [vmem:[#allocation2 + $0x10] sm:$0xff] %vm202, %v1021
        %1039 = vst.msk [vmem:[#allocation2 + $0x18] sm:$0xff] %vm202, %v1022
        %1040 = vst.msk [vmem:[#allocation2 + $0x20] sm:$0xff] %vm202, %v1023
        %1041 = vst.msk [vmem:[#allocation2 + $0x28] sm:$0xff] %vm202, %v1024
        %1042 = vst.msk [vmem:[#allocation2 + $0x30] sm:$0xff] %vm202, %v1025
        %1043 = vst.msk [vmem:[#allocation2 + $0x38] sm:$0xff] %vm202, %v1026
        %1044 = vst.msk [vmem:[#allocation2 + $0x40] sm:$0xff] %vm202, %v1027
        %1045 = vst.msk [vmem:[#allocation2 + $0x48] sm:$0xff] %vm202, %v1028
        %1046 = vst.msk [vmem:[#allocation2 + $0x50] sm:$0xff] %vm202, %v1029
        %1047 = vst.msk [vmem:[#allocation2 + $0x58] sm:$0xff] %vm202, %v1030
        %1048 = vst.msk [vmem:[#allocation2 + $0x60] sm:$0xff] %vm202, %v1031
        %1049 = vst.msk [vmem:[#allocation2 + $0x68] sm:$0xff] %vm202, %v1032
        %1050 = vst.msk [vmem:[#allocation2 + $0x70] sm:$0xff] %vm202, %v1033
        %1051 = vst.msk [vmem:[#allocation2 + $0x78] sm:$0xff] %vm202, %v1034
        %1052 = vst.msk [vmem:[#allocation2 + $0x80] sm:$0xff] %vm202, %v1035
        %1053 = vst.msk [vmem:[#allocation2 + $0x88] sm:$0x1] %vm200, 0.0
        %v1054 = vld [vmem:[#allocation2 + $0x7] sm:$0xff]
        %v1055 = vld [vmem:[#allocation2 + $0xf] sm:$0xff]
        %v1056 = vld [vmem:[#allocation2 + $0x17] sm:$0xff]
        %v1057 = vld [vmem:[#allocation2 + $0x1f] sm:$0xff]
        %v1058 = vld [vmem:[#allocation2 + $0x27] sm:$0xff]
        %v1059 = vld [vmem:[#allocation2 + $0x2f] sm:$0xff]
        %v1060 = vld [vmem:[#allocation2 + $0x37] sm:$0xff]
        %v1061 = vld [vmem:[#allocation2 + $0x3f] sm:$0xff]
        %v1062 = vld [vmem:[#allocation2 + $0x47] sm:$0xff]
        %v1063 = vld [vmem:[#allocation2 + $0x4f] sm:$0xff]
        %v1064 = vld [vmem:[#allocation2 + $0x57] sm:$0xff]
        %v1065 = vld [vmem:[#allocation2 + $0x5f] sm:$0xff]
        %v1066 = vld [vmem:[#allocation2 + $0x67] sm:$0xff]
        %v1067 = vld [vmem:[#allocation2 + $0x6f] sm:$0xff]
        %v1068 = vld [vmem:[#allocation2 + $0x77] sm:$0xff]
        %v1069 = vld [vmem:[#allocation2 + $0x7f] sm:$0xff]
        %v1070 = vld [vmem:[#allocation2 + $0x8] sm:$0xff]
        %v1071 = vld [vmem:[#allocation2 + $0x10] sm:$0xff]
        %v1072 = vld [vmem:[#allocation2 + $0x18] sm:$0xff]
        %v1073 = vld [vmem:[#allocation2 + $0x20] sm:$0xff]
        %v1074 = vld [vmem:[#allocation2 + $0x28] sm:$0xff]
        %v1075 = vld [vmem:[#allocation2 + $0x30] sm:$0xff]
        %v1076 = vld [vmem:[#allocation2 + $0x38] sm:$0xff]
        %v1077 = vld [vmem:[#allocation2 + $0x40] sm:$0xff]
        %v1078 = vld [vmem:[#allocation2 + $0x48] sm:$0xff]
        %v1079 = vld [vmem:[#allocation2 + $0x50] sm:$0xff]
        %v1080 = vld [vmem:[#allocation2 + $0x58] sm:$0xff]
        %v1081 = vld [vmem:[#allocation2 + $0x60] sm:$0xff]
        %v1082 = vld [vmem:[#allocation2 + $0x68] sm:$0xff]
        %v1083 = vld [vmem:[#allocation2 + $0x70] sm:$0xff]
        %v1084 = vld [vmem:[#allocation2 + $0x78] sm:$0xff]
        %v1085 = vld [vmem:[#allocation2 + $0x80] sm:$0xff]
        %v1086 = vld [vmem:[#allocation2 + $0x9] sm:$0xff]
        %v1087 = vld [vmem:[#allocation2 + $0x11] sm:$0xff]
        %v1088 = vld [vmem:[#allocation2 + $0x19] sm:$0xff]
        %v1089 = vld [vmem:[#allocation2 + $0x21] sm:$0xff]
        %v1090 = vld [vmem:[#allocation2 + $0x29] sm:$0xff]
        %v1091 = vld [vmem:[#allocation2 + $0x31] sm:$0xff]
        %v1092 = vld [vmem:[#allocation2 + $0x39] sm:$0xff]
        %v1093 = vld [vmem:[#allocation2 + $0x41] sm:$0xff]
        %v1094 = vld [vmem:[#allocation2 + $0x49] sm:$0xff]
        %v1095 = vld [vmem:[#allocation2 + $0x51] sm:$0xff]
        %v1096 = vld [vmem:[#allocation2 + $0x59] sm:$0xff]
        %v1097 = vld [vmem:[#allocation2 + $0x61] sm:$0xff]
        %v1098 = vld [vmem:[#allocation2 + $0x69] sm:$0xff]
        %v1099 = vld [vmem:[#allocation2 + $0x71] sm:$0xff]
        %v1100 = vld [vmem:[#allocation2 + $0x79] sm:$0xff]
        %v1101 = vld [vmem:[#allocation2 + $0x81] sm:$0xff]
        %1118 = vrot.lane.b32.xlu0 %v1070, 64
        %v1119 = vpop.permute.xlu0 %1118
        %1120 = vrot.lane.b32.xlu0 %v1071, 64
        %v1121 = vpop.permute.xlu0 %1120
        %1122 = vrot.lane.b32.xlu0 %v1072, 64
        %v1123 = vpop.permute.xlu0 %1122
        %1124 = vrot.lane.b32.xlu0 %v1073, 64
        %v1125 = vpop.permute.xlu0 %1124
        %1126 = vrot.lane.b32.xlu0 %v1074, 64
        %v1127 = vpop.permute.xlu0 %1126
        %1128 = vrot.lane.b32.xlu0 %v1075, 64
        %v1129 = vpop.permute.xlu0 %1128
        %1130 = vrot.lane.b32.xlu0 %v1076, 64
        %v1131 = vpop.permute.xlu0 %1130
        %1132 = vrot.lane.b32.xlu0 %v1077, 64
        %v1133 = vpop.permute.xlu0 %1132
        %1134 = vrot.lane.b32.xlu0 %v1078, 64
        %v1135 = vpop.permute.xlu0 %1134
        %1136 = vrot.lane.b32.xlu0 %v1079, 64
        %v1137 = vpop.permute.xlu0 %1136
        %1138 = vrot.lane.b32.xlu0 %v1080, 64
        %v1139 = vpop.permute.xlu0 %1138
        %1140 = vrot.lane.b32.xlu0 %v1081, 64
        %v1141 = vpop.permute.xlu0 %1140
        %1142 = vrot.lane.b32.xlu0 %v1082, 64
        %v1143 = vpop.permute.xlu0 %1142
        %1144 = vrot.lane.b32.xlu0 %v1083, 64
        %v1145 = vpop.permute.xlu0 %1144
        %1146 = vrot.lane.b32.xlu0 %v1084, 64
        %v1147 = vpop.permute.xlu0 %1146
        %1148 = vrot.lane.b32.xlu0 %v1085, 64
        %v1149 = vpop.permute.xlu0 %1148
        %v1166 = vsel %vm202, %v1054, %v1119
        %v1167 = vsel %vm202, %v1055, %v1121
        %v1168 = vsel %vm202, %v1056, %v1123
        %v1169 = vsel %vm202, %v1057, %v1125
        %v1170 = vsel %vm202, %v1058, %v1127
        %v1171 = vsel %vm202, %v1059, %v1129
        %v1172 = vsel %vm202, %v1060, %v1131
        %v1173 = vsel %vm202, %v1061, %v1133
        %v1174 = vsel %vm202, %v1062, %v1135
        %v1175 = vsel %vm202, %v1063, %v1137
        %v1176 = vsel %vm202, %v1064, %v1139
        %v1177 = vsel %vm202, %v1065, %v1141
        %v1178 = vsel %vm202, %v1066, %v1143
        %v1179 = vsel %vm202, %v1067, %v1145
        %v1180 = vsel %vm202, %v1068, %v1147
        %v1181 = vsel %vm202, %v1069, %v1149
        %s1182 = scalar_lea.vmem %s1, 192
        %v1183 = vld [vmem:[%s1182] sm:$0xff]
        %v1184 = vld [vmem:[%s1182 + $0x8] sm:$0xff]
        %v1185 = vld [vmem:[%s1182 + $0x10] sm:$0xff]
        %v1186 = vld [vmem:[%s1182 + $0x18] sm:$0xff]
        %v1187 = vld [vmem:[%s1182 + $0x20] sm:$0xff]
        %v1188 = vld [vmem:[%s1182 + $0x28] sm:$0xff]
        %v1189 = vld [vmem:[%s1182 + $0x30] sm:$0xff]
        %v1190 = vld [vmem:[%s1182 + $0x38] sm:$0xff]
        %v1191 = vld [vmem:[%s1182 + $0x40] sm:$0xff]
        %v1192 = vld [vmem:[%s1182 + $0x48] sm:$0xff]
        %v1193 = vld [vmem:[%s1182 + $0x50] sm:$0xff]
        %v1194 = vld [vmem:[%s1182 + $0x58] sm:$0xff]
        %v1195 = vld [vmem:[%s1182 + $0x60] sm:$0xff]
        %v1196 = vld [vmem:[%s1182 + $0x68] sm:$0xff]
        %v1197 = vld [vmem:[%s1182 + $0x70] sm:$0xff]
        %v1198 = vld [vmem:[%s1182 + $0x78] sm:$0xff]
        %v1199 = vld [vmem:[%s1182 + $0x80] sm:$0xff]
        %v1200 = vld [vmem:[%s1182 + $0x88] sm:$0xff]
        %v1201 = vld [vmem:[%s1182 + $0x90] sm:$0xff]
        %v1202 = vld [vmem:[%s1182 + $0x98] sm:$0xff]
        %v1203 = vld [vmem:[%s1182 + $0xa0] sm:$0xff]
        %v1204 = vld [vmem:[%s1182 + $0xa8] sm:$0xff]
        %v1205 = vld [vmem:[%s1182 + $0xb0] sm:$0xff]
        %v1206 = vld [vmem:[%s1182 + $0xb8] sm:$0xff]
        %s1207 = scalar_lea.vmem %s2, 1
        %v1208 = vld [vmem:[%s1207] sm:$0x1]
        %v1210 = vperm.slane %v1208, 0
        %v1213 = vsel %vm202, %v1086, 0
        %v1216 = vsel %vm202, %v1087, 0
        %v1219 = vsel %vm202, %v1088, 0
        %v1222 = vsel %vm202, %v1089, 0
        %v1225 = vsel %vm202, %v1090, 0
        %v1228 = vsel %vm202, %v1091, 0
        %v1231 = vsel %vm202, %v1092, 0
        %v1234 = vsel %vm202, %v1093, 0
        %v1237 = vsel %vm202, %v1094, 0
        %v1240 = vsel %vm202, %v1095, 0
        %v1243 = vsel %vm202, %v1096, 0
        %v1246 = vsel %vm202, %v1097, 0
        %v1249 = vsel %vm202, %v1098, 0
        %v1252 = vsel %vm202, %v1099, 0
        %v1255 = vsel %vm202, %v1100, 0
        %v1258 = vsel %vm202, %v1101, 0
        %1260 = vmatpush.msra.mxu0 %v1198
        %1261 = vmatpush.msra.mxu0 %v1197
        %1262 = vmatpush.msra.mxu0 %v1196
        %1263 = vmatpush.msra.mxu0 %v1195
        %1264 = vmatpush.msra.mxu0 %v1194
        %1265 = vmatpush.msra.mxu0 %v1193
        %1266 = vmatpush.msra.mxu0 %v1192
        %1267 = vmatpush.msra.mxu0 %v1191
        %1268 = vmatpush.msra.mxu0 %v1190
        %1269 = vmatpush.msra.mxu0 %v1189
        %1270 = vmatpush.msra.mxu0 %v1188
        %1271 = vmatpush.msra.mxu0 %v1187
        %1272 = vmatpush.msra.mxu0 %v1186
        %1273 = vmatpush.msra.mxu0 %v1185
        %1274 = vmatpush.msra.mxu0 %v1184
        %1275 = vmatpush.msra.mxu0 %v1183
        %1276 = vmatmul.f32.gmra.mxu0 %v1166
        %v1277 = vpop.f32.mrf.mxu0
        %v1278 = vadd.f32 %v1210, %v1277
        %1279 = vmatmul.f32.gmra.mxu0 %v1167
        %v1280 = vpop.f32.mrf.mxu0
        %v1281 = vadd.f32 %v1210, %v1280
        %1282 = vmatmul.f32.gmra.mxu0 %v1168
        %v1283 = vpop.f32.mrf.mxu0
        %v1284 = vadd.f32 %v1210, %v1283
        %1285 = vmatmul.f32.gmra.mxu0 %v1169
        %v1286 = vpop.f32.mrf.mxu0
        %v1287 = vadd.f32 %v1210, %v1286
        %1288 = vmatmul.f32.gmra.mxu0 %v1170
        %v1289 = vpop.f32.mrf.mxu0
        %v1290 = vadd.f32 %v1210, %v1289
        %1291 = vmatmul.f32.gmra.mxu0 %v1171
        %v1292 = vpop.f32.mrf.mxu0
        %v1293 = vadd.f32 %v1210, %v1292
        %1294 = vmatmul.f32.gmra.mxu0 %v1172
        %v1295 = vpop.f32.mrf.mxu0
        %v1296 = vadd.f32 %v1210, %v1295
        %1297 = vmatmul.f32.gmra.mxu0 %v1173
        %v1298 = vpop.f32.mrf.mxu0
        %v1299 = vadd.f32 %v1210, %v1298
        %1300 = vmatmul.f32.gmra.mxu0 %v1174
        %v1301 = vpop.f32.mrf.mxu0
        %v1302 = vadd.f32 %v1210, %v1301
        %1303 = vmatmul.f32.gmra.mxu0 %v1175
        %v1304 = vpop.f32.mrf.mxu0
        %v1305 = vadd.f32 %v1210, %v1304
        %1306 = vmatmul.f32.gmra.mxu0 %v1176
        %v1307 = vpop.f32.mrf.mxu0
        %v1308 = vadd.f32 %v1210, %v1307
        %1309 = vmatmul.f32.gmra.mxu0 %v1177
        %v1310 = vpop.f32.mrf.mxu0
        %v1311 = vadd.f32 %v1210, %v1310
        %1312 = vmatmul.f32.gmra.mxu0 %v1178
        %v1313 = vpop.f32.mrf.mxu0
        %v1314 = vadd.f32 %v1210, %v1313
        %1315 = vmatmul.f32.gmra.mxu0 %v1179
        %v1316 = vpop.f32.mrf.mxu0
        %v1317 = vadd.f32 %v1210, %v1316
        %1318 = vmatmul.f32.gmra.mxu0 %v1180
        %v1319 = vpop.f32.mrf.mxu0
        %v1320 = vadd.f32 %v1210, %v1319
        %1321 = vmatmul.f32.gmra.mxu0 %v1181
        %v1322 = vpop.f32.mrf.mxu0
        %v1323 = vadd.f32 %v1210, %v1322
        %1324 = vdwg.mxu0
        %1325 = vmatpush.msra.mxu0 0.0
        %1326 = vmatpush.msra.mxu0 0.0
        %1327 = vmatpush.msra.mxu0 0.0
        %1328 = vmatpush.msra.mxu0 0.0
        %1329 = vmatpush.msra.mxu0 0.0
        %1330 = vmatpush.msra.mxu0 0.0
        %1331 = vmatpush.msra.mxu0 0.0
        %1332 = vmatpush.msra.mxu0 0.0
        %1333 = vmatpush.msra.mxu0 %v1206
        %1334 = vmatpush.msra.mxu0 %v1205
        %1335 = vmatpush.msra.mxu0 %v1204
        %1336 = vmatpush.msra.mxu0 %v1203
        %1337 = vmatpush.msra.mxu0 %v1202
        %1338 = vmatpush.msra.mxu0 %v1201
        %1339 = vmatpush.msra.mxu0 %v1200
        %1340 = vmatpush.msra.mxu0 %v1199
        %1341 = vmatmul.f32.gmra.mxu0 %v1213
        %v1342 = vpop.f32.mrf.mxu0
        %v1343 = vadd.f32 %v1278, %v1342
        %1344 = vmatmul.f32.gmra.mxu0 %v1216
        %v1345 = vpop.f32.mrf.mxu0
        %v1346 = vadd.f32 %v1281, %v1345
        %1347 = vmatmul.f32.gmra.mxu0 %v1219
        %v1348 = vpop.f32.mrf.mxu0
        %v1349 = vadd.f32 %v1284, %v1348
        %1350 = vmatmul.f32.gmra.mxu0 %v1222
        %v1351 = vpop.f32.mrf.mxu0
        %v1352 = vadd.f32 %v1287, %v1351
        %1353 = vmatmul.f32.gmra.mxu0 %v1225
        %v1354 = vpop.f32.mrf.mxu0
        %v1355 = vadd.f32 %v1290, %v1354
        %1356 = vmatmul.f32.gmra.mxu0 %v1228
        %v1357 = vpop.f32.mrf.mxu0
        %v1358 = vadd.f32 %v1293, %v1357
        %1359 = vmatmul.f32.gmra.mxu0 %v1231
        %v1360 = vpop.f32.mrf.mxu0
        %v1361 = vadd.f32 %v1296, %v1360
        %1362 = vmatmul.f32.gmra.mxu0 %v1234
        %v1363 = vpop.f32.mrf.mxu0
        %v1364 = vadd.f32 %v1299, %v1363
        %1365 = vmatmul.f32.gmra.mxu0 %v1237
        %v1366 = vpop.f32.mrf.mxu0
        %v1367 = vadd.f32 %v1302, %v1366
        %1368 = vmatmul.f32.gmra.mxu0 %v1240
        %v1369 = vpop.f32.mrf.mxu0
        %v1370 = vadd.f32 %v1305, %v1369
        %1371 = vmatmul.f32.gmra.mxu0 %v1243
        %v1372 = vpop.f32.mrf.mxu0
        %v1373 = vadd.f32 %v1308, %v1372
        %1374 = vmatmul.f32.gmra.mxu0 %v1246
        %v1375 = vpop.f32.mrf.mxu0
        %v1376 = vadd.f32 %v1311, %v1375
        %1377 = vmatmul.f32.gmra.mxu0 %v1249
        %v1378 = vpop.f32.mrf.mxu0
        %v1379 = vadd.f32 %v1314, %v1378
        %1380 = vmatmul.f32.gmra.mxu0 %v1252
        %v1381 = vpop.f32.mrf.mxu0
        %v1382 = vadd.f32 %v1317, %v1381
        %1383 = vmatmul.f32.gmra.mxu0 %v1255
        %v1384 = vpop.f32.mrf.mxu0
        %v1385 = vadd.f32 %v1320, %v1384
        %1386 = vmatmul.f32.gmra.mxu0 %v1258
        %v1387 = vpop.f32.mrf.mxu0
        %v1388 = vadd.f32 %v1323, %v1387
        %1389 = vdwg.mxu0
        %v1390 = vmax.f32 %v1343, 0.0
        %v1391 = vmax.f32 %v1346, 0.0
        %v1392 = vmax.f32 %v1349, 0.0
        %v1393 = vmax.f32 %v1352, 0.0
        %v1394 = vmax.f32 %v1355, 0.0
        %v1395 = vmax.f32 %v1358, 0.0
        %v1396 = vmax.f32 %v1361, 0.0
        %v1397 = vmax.f32 %v1364, 0.0
        %v1398 = vmax.f32 %v1367, 0.0
        %v1399 = vmax.f32 %v1370, 0.0
        %v1400 = vmax.f32 %v1373, 0.0
        %v1401 = vmax.f32 %v1376, 0.0
        %v1402 = vmax.f32 %v1379, 0.0
        %v1403 = vmax.f32 %v1382, 0.0
        %v1404 = vmax.f32 %v1385, 0.0
        %v1405 = vmax.f32 %v1388, 0.0
        %1406 = vst.msk [vmem:[#allocation2 + $0x7] sm:$0x1] %vm200, 0.0
        %1407 = vst.msk [vmem:[#allocation2 + $0x8] sm:$0xff] %vm202, %v1390
        %1408 = vst.msk [vmem:[#allocation2 + $0x10] sm:$0xff] %vm202, %v1391
        %1409 = vst.msk [vmem:[#allocation2 + $0x18] sm:$0xff] %vm202, %v1392
        %1410 = vst.msk [vmem:[#allocation2 + $0x20] sm:$0xff] %vm202, %v1393
        %1411 = vst.msk [vmem:[#allocation2 + $0x28] sm:$0xff] %vm202, %v1394
        %1412 = vst.msk [vmem:[#allocation2 + $0x30] sm:$0xff] %vm202, %v1395
        %1413 = vst.msk [vmem:[#allocation2 + $0x38] sm:$0xff] %vm202, %v1396
        %1414 = vst.msk [vmem:[#allocation2 + $0x40] sm:$0xff] %vm202, %v1397
        %1415 = vst.msk [vmem:[#allocation2 + $0x48] sm:$0xff] %vm202, %v1398
        %1416 = vst.msk [vmem:[#allocation2 + $0x50] sm:$0xff] %vm202, %v1399
        %1417 = vst.msk [vmem:[#allocation2 + $0x58] sm:$0xff] %vm202, %v1400
        %1418 = vst.msk [vmem:[#allocation2 + $0x60] sm:$0xff] %vm202, %v1401
        %1419 = vst.msk [vmem:[#allocation2 + $0x68] sm:$0xff] %vm202, %v1402
        %1420 = vst.msk [vmem:[#allocation2 + $0x70] sm:$0xff] %vm202, %v1403
        %1421 = vst.msk [vmem:[#allocation2 + $0x78] sm:$0xff] %vm202, %v1404
        %1422 = vst.msk [vmem:[#allocation2 + $0x80] sm:$0xff] %vm202, %v1405
        %1423 = vst.msk [vmem:[#allocation2 + $0x88] sm:$0x1] %vm200, 0.0
        %v1424 = vld [vmem:[%s908] ss:$2 sm:$0xff]
        %v1425 = vld [vmem:[%s910] ss:$2 sm:$0xff]
        %v1426 = vld [vmem:[%s912] ss:$2 sm:$0xff]
        %v1427 = vld [vmem:[%s914] ss:$2 sm:$0xff]
        %v1428 = vld [vmem:[%s916] ss:$2 sm:$0xff]
        %v1429 = vld [vmem:[%s918] ss:$2 sm:$0xff]
        %v1430 = vld [vmem:[%s920] ss:$2 sm:$0xff]
        %v1431 = vld [vmem:[%s922] ss:$2 sm:$0xff]
        %v1432 = vld [vmem:[%s940] ss:$2 sm:$0xff]
        %v1433 = vld [vmem:[%s942] ss:$2 sm:$0xff]
        %v1434 = vld [vmem:[%s944] ss:$2 sm:$0xff]
        %v1435 = vld [vmem:[%s946] ss:$2 sm:$0xff]
        %v1436 = vld [vmem:[%s948] ss:$2 sm:$0xff]
        %v1437 = vld [vmem:[%s950] ss:$2 sm:$0xff]
        %v1438 = vld [vmem:[%s952] ss:$2 sm:$0xff]
        %v1439 = vld [vmem:[%s954] ss:$2 sm:$0xff]
        %v1440 = vmax.f32 %v1424, %v1432
        %v1441 = vmax.f32 %v1425, %v1433
        %v1442 = vmax.f32 %v1426, %v1434
        %v1443 = vmax.f32 %v1427, %v1435
        %v1444 = vmax.f32 %v1428, %v1436
        %v1445 = vmax.f32 %v1429, %v1437
        %v1446 = vmax.f32 %v1430, %v1438
        %v1447 = vmax.f32 %v1431, %v1439
        %v1448 = vld [vmem:[%s988] ss:$2 sm:$0xff]
        %v1449 = vld [vmem:[%s990] ss:$2 sm:$0xff]
        %v1450 = vld [vmem:[%s992] ss:$2 sm:$0xff]
        %v1451 = vld [vmem:[%s994] ss:$2 sm:$0xff]
        %v1452 = vld [vmem:[%s996] ss:$2 sm:$0xff]
        %v1453 = vld [vmem:[%s998] ss:$2 sm:$0xff]
        %v1454 = vld [vmem:[%s1000] ss:$2 sm:$0xff]
        %v1455 = vld [vmem:[%s1002] ss:$2 sm:$0xff]
        %v1456 = vmax.f32 %v1440, %v1448
        %v1457 = vmax.f32 %v1441, %v1449
        %v1458 = vmax.f32 %v1442, %v1450
        %v1459 = vmax.f32 %v1443, %v1451
        %v1460 = vmax.f32 %v1444, %v1452
        %v1461 = vmax.f32 %v1445, %v1453
        %v1462 = vmax.f32 %v1446, %v1454
        %v1463 = vmax.f32 %v1447, %v1455
        %1464 = vst.msk [vmem:[#allocation2 + $0x7] sm:$0x1] %vm200, 0.0
        %1465 = vst.msk [vmem:[#allocation2 + $0x8] sm:$0xff] %vm202, %v1456
        %1466 = vst.msk [vmem:[#allocation2 + $0x10] sm:$0xff] %vm202, %v1457
        %1467 = vst.msk [vmem:[#allocation2 + $0x18] sm:$0xff] %vm202, %v1458
        %1468 = vst.msk [vmem:[#allocation2 + $0x20] sm:$0xff] %vm202, %v1459
        %1469 = vst.msk [vmem:[#allocation2 + $0x28] sm:$0xff] %vm202, %v1460
        %1470 = vst.msk [vmem:[#allocation2 + $0x30] sm:$0xff] %vm202, %v1461
        %1471 = vst.msk [vmem:[#allocation2 + $0x38] sm:$0xff] %vm202, %v1462
        %1472 = vst.msk [vmem:[#allocation2 + $0x40] sm:$0xff] %vm202, %v1463
        %1473 = vst.msk [vmem:[#allocation2 + $0x48] sm:$0x1] %vm200, 0.0
        %v1474 = vld [vmem:[#allocation2 + $0x7] sm:$0xff]
        %v1475 = vld [vmem:[#allocation2 + $0xf] sm:$0xff]
        %v1476 = vld [vmem:[#allocation2 + $0x17] sm:$0xff]
        %v1477 = vld [vmem:[#allocation2 + $0x1f] sm:$0xff]
        %v1478 = vld [vmem:[#allocation2 + $0x27] sm:$0xff]
        %v1479 = vld [vmem:[#allocation2 + $0x2f] sm:$0xff]
        %v1480 = vld [vmem:[#allocation2 + $0x37] sm:$0xff]
        %v1481 = vld [vmem:[#allocation2 + $0x3f] sm:$0xff]
        %v1482 = vld [vmem:[#allocation2 + $0x8] sm:$0xff]
        %v1483 = vld [vmem:[#allocation2 + $0x10] sm:$0xff]
        %v1484 = vld [vmem:[#allocation2 + $0x18] sm:$0xff]
        %v1485 = vld [vmem:[#allocation2 + $0x20] sm:$0xff]
        %v1486 = vld [vmem:[#allocation2 + $0x28] sm:$0xff]
        %v1487 = vld [vmem:[#allocation2 + $0x30] sm:$0xff]
        %v1488 = vld [vmem:[#allocation2 + $0x38] sm:$0xff]
        %v1489 = vld [vmem:[#allocation2 + $0x40] sm:$0xff]
        %v1490 = vld [vmem:[#allocation2 + $0x9] sm:$0xff]
        %v1491 = vld [vmem:[#allocation2 + $0x11] sm:$0xff]
        %v1492 = vld [vmem:[#allocation2 + $0x19] sm:$0xff]
        %v1493 = vld [vmem:[#allocation2 + $0x21] sm:$0xff]
        %v1494 = vld [vmem:[#allocation2 + $0x29] sm:$0xff]
        %v1495 = vld [vmem:[#allocation2 + $0x31] sm:$0xff]
        %v1496 = vld [vmem:[#allocation2 + $0x39] sm:$0xff]
        %v1497 = vld [vmem:[#allocation2 + $0x41] sm:$0xff]
        %1506 = vrot.lane.b32.xlu0 %v1482, 64
        %v1507 = vpop.permute.xlu0 %1506
        %1508 = vrot.lane.b32.xlu0 %v1483, 64
        %v1509 = vpop.permute.xlu0 %1508
        %1510 = vrot.lane.b32.xlu0 %v1484, 64
        %v1511 = vpop.permute.xlu0 %1510
        %1512 = vrot.lane.b32.xlu0 %v1485, 64
        %v1513 = vpop.permute.xlu0 %1512
        %1514 = vrot.lane.b32.xlu0 %v1486, 64
        %v1515 = vpop.permute.xlu0 %1514
        %1516 = vrot.lane.b32.xlu0 %v1487, 64
        %v1517 = vpop.permute.xlu0 %1516
        %1518 = vrot.lane.b32.xlu0 %v1488, 64
        %v1519 = vpop.permute.xlu0 %1518
        %1520 = vrot.lane.b32.xlu0 %v1489, 64
        %v1521 = vpop.permute.xlu0 %1520
        %v1530 = vsel %vm202, %v1474, %v1507
        %v1531 = vsel %vm202, %v1475, %v1509
        %v1532 = vsel %vm202, %v1476, %v1511
        %v1533 = vsel %vm202, %v1477, %v1513
        %v1534 = vsel %vm202, %v1478, %v1515
        %v1535 = vsel %vm202, %v1479, %v1517
        %v1536 = vsel %vm202, %v1480, %v1519
        %v1537 = vsel %vm202, %v1481, %v1521
        %s1538 = scalar_lea.vmem %s1, 384
        %v1539 = vld [vmem:[%s1538] sm:$0xff]
        %v1540 = vld [vmem:[%s1538 + $0x8] sm:$0xff]
        %v1541 = vld [vmem:[%s1538 + $0x10] sm:$0xff]
        %v1542 = vld [vmem:[%s1538 + $0x18] sm:$0xff]
        %v1543 = vld [vmem:[%s1538 + $0x20] sm:$0xff]
        %v1544 = vld [vmem:[%s1538 + $0x28] sm:$0xff]
        %v1545 = vld [vmem:[%s1538 + $0x30] sm:$0xff]
        %v1546 = vld [vmem:[%s1538 + $0x38] sm:$0xff]
        %v1547 = vld [vmem:[%s1538 + $0x40] sm:$0xff]
        %v1548 = vld [vmem:[%s1538 + $0x48] sm:$0xff]
        %v1549 = vld [vmem:[%s1538 + $0x50] sm:$0xff]
        %v1550 = vld [vmem:[%s1538 + $0x58] sm:$0xff]
        %v1551 = vld [vmem:[%s1538 + $0x60] sm:$0xff]
        %v1552 = vld [vmem:[%s1538 + $0x68] sm:$0xff]
        %v1553 = vld [vmem:[%s1538 + $0x70] sm:$0xff]
        %v1554 = vld [vmem:[%s1538 + $0x78] sm:$0xff]
        %v1555 = vld [vmem:[%s1538 + $0x80] sm:$0xff]
        %v1556 = vld [vmem:[%s1538 + $0x88] sm:$0xff]
        %v1557 = vld [vmem:[%s1538 + $0x90] sm:$0xff]
        %v1558 = vld [vmem:[%s1538 + $0x98] sm:$0xff]
        %v1559 = vld [vmem:[%s1538 + $0xa0] sm:$0xff]
        %v1560 = vld [vmem:[%s1538 + $0xa8] sm:$0xff]
        %v1561 = vld [vmem:[%s1538 + $0xb0] sm:$0xff]
        %v1562 = vld [vmem:[%s1538 + $0xb8] sm:$0xff]
        %s1563 = scalar_lea.vmem %s2, 2
        %v1564 = vld [vmem:[%s1563] sm:$0x1]
        %v1566 = vperm.slane %v1564, 0
        %v1569 = vsel %vm202, %v1490, 0
        %v1572 = vsel %vm202, %v1491, 0
        %v1575 = vsel %vm202, %v1492, 0
        %v1578 = vsel %vm202, %v1493, 0
        %v1581 = vsel %vm202, %v1494, 0
        %v1584 = vsel %vm202, %v1495, 0
        %v1587 = vsel %vm202, %v1496, 0
        %v1590 = vsel %vm202, %v1497, 0
        %1592 = vmatpush.msra.mxu0 %v1554
        %1593 = vmatpush.msra.mxu0 %v1553
        %1594 = vmatpush.msra.mxu0 %v1552
        %1595 = vmatpush.msra.mxu0 %v1551
        %1596 = vmatpush.msra.mxu0 %v1550
        %1597 = vmatpush.msra.mxu0 %v1549
        %1598 = vmatpush.msra.mxu0 %v1548
        %1599 = vmatpush.msra.mxu0 %v1547
        %1600 = vmatpush.msra.mxu0 %v1546
        %1601 = vmatpush.msra.mxu0 %v1545
        %1602 = vmatpush.msra.mxu0 %v1544
        %1603 = vmatpush.msra.mxu0 %v1543
        %1604 = vmatpush.msra.mxu0 %v1542
        %1605 = vmatpush.msra.mxu0 %v1541
        %1606 = vmatpush.msra.mxu0 %v1540
        %1607 = vmatpush.msra.mxu0 %v1539
        %1608 = vmatmul.f32.gmra.mxu0 %v1530
        %v1609 = vpop.f32.mrf.mxu0
        %v1610 = vadd.f32 %v1566, %v1609
        %1611 = vmatmul.f32.gmra.mxu0 %v1531
        %v1612 = vpop.f32.mrf.mxu0
        %v1613 = vadd.f32 %v1566, %v1612
        %1614 = vmatmul.f32.gmra.mxu0 %v1532
        %v1615 = vpop.f32.mrf.mxu0
        %v1616 = vadd.f32 %v1566, %v1615
        %1617 = vmatmul.f32.gmra.mxu0 %v1533
        %v1618 = vpop.f32.mrf.mxu0
        %v1619 = vadd.f32 %v1566, %v1618
        %1620 = vmatmul.f32.gmra.mxu0 %v1534
        %v1621 = vpop.f32.mrf.mxu0
        %v1622 = vadd.f32 %v1566, %v1621
        %1623 = vmatmul.f32.gmra.mxu0 %v1535
        %v1624 = vpop.f32.mrf.mxu0
        %v1625 = vadd.f32 %v1566, %v1624
        %1626 = vmatmul.f32.gmra.mxu0 %v1536
        %v1627 = vpop.f32.mrf.mxu0
        %v1628 = vadd.f32 %v1566, %v1627
        %1629 = vmatmul.f32.gmra.mxu0 %v1537
        %v1630 = vpop.f32.mrf.mxu0
        %v1631 = vadd.f32 %v1566, %v1630
        %1632 = vdwg.mxu0
        %1633 = vmatpush.msra.mxu0 0.0
        %1634 = vmatpush.msra.mxu0 0.0
        %1635 = vmatpush.msra.mxu0 0.0
        %1636 = vmatpush.msra.mxu0 0.0
        %1637 = vmatpush.msra.mxu0 0.0
        %1638 = vmatpush.msra.mxu0 0.0
        %1639 = vmatpush.msra.mxu0 0.0
        %1640 = vmatpush.msra.mxu0 0.0
        %1641 = vmatpush.msra.mxu0 %v1562
        %1642 = vmatpush.msra.mxu0 %v1561
        %1643 = vmatpush.msra.mxu0 %v1560
        %1644 = vmatpush.msra.mxu0 %v1559
        %1645 = vmatpush.msra.mxu0 %v1558
        %1646 = vmatpush.msra.mxu0 %v1557
        %1647 = vmatpush.msra.mxu0 %v1556
        %1648 = vmatpush.msra.mxu0 %v1555
        %1649 = vmatmul.f32.gmra.mxu0 %v1569
        %v1650 = vpop.f32.mrf.mxu0
        %v1651 = vadd.f32 %v1610, %v1650
        %1652 = vmatmul.f32.gmra.mxu0 %v1572
        %v1653 = vpop.f32.mrf.mxu0
        %v1654 = vadd.f32 %v1613, %v1653
        %1655 = vmatmul.f32.gmra.mxu0 %v1575
        %v1656 = vpop.f32.mrf.mxu0
        %v1657 = vadd.f32 %v1616, %v1656
        %1658 = vmatmul.f32.gmra.mxu0 %v1578
        %v1659 = vpop.f32.mrf.mxu0
        %v1660 = vadd.f32 %v1619, %v1659
        %1661 = vmatmul.f32.gmra.mxu0 %v1581
        %v1662 = vpop.f32.mrf.mxu0
        %v1663 = vadd.f32 %v1622, %v1662
        %1664 = vmatmul.f32.gmra.mxu0 %v1584
        %v1665 = vpop.f32.mrf.mxu0
        %v1666 = vadd.f32 %v1625, %v1665
        %1667 = vmatmul.f32.gmra.mxu0 %v1587
        %v1668 = vpop.f32.mrf.mxu0
        %v1669 = vadd.f32 %v1628, %v1668
        %1670 = vmatmul.f32.gmra.mxu0 %v1590
        %v1671 = vpop.f32.mrf.mxu0
        %v1672 = vadd.f32 %v1631, %v1671
        %1673 = vdwg.mxu0
        %v1674 = vmax.f32 %v1651, 0.0
        %v1675 = vmax.f32 %v1654, 0.0
        %v1676 = vmax.f32 %v1657, 0.0
        %v1677 = vmax.f32 %v1660, 0.0
        %v1678 = vmax.f32 %v1663, 0.0
        %v1679 = vmax.f32 %v1666, 0.0
        %v1680 = vmax.f32 %v1669, 0.0
        %v1681 = vmax.f32 %v1672, 0.0
        %1682 = vst.msk [vmem:[#allocation2 + $0x7] sm:$0x1] %vm200, 0.0
        %1683 = vst.msk [vmem:[#allocation2 + $0x8] sm:$0xff] %vm202, %v1674
        %1684 = vst.msk [vmem:[#allocation2 + $0x10] sm:$0xff] %vm202, %v1675
        %1685 = vst.msk [vmem:[#allocation2 + $0x18] sm:$0xff] %vm202, %v1676
        %1686 = vst.msk [vmem:[#allocation2 + $0x20] sm:$0xff] %vm202, %v1677
        %1687 = vst.msk [vmem:[#allocation2 + $0x28] sm:$0xff] %vm202, %v1678
        %1688 = vst.msk [vmem:[#allocation2 + $0x30] sm:$0xff] %vm202, %v1679
        %1689 = vst.msk [vmem:[#allocation2 + $0x38] sm:$0xff] %vm202, %v1680
        %1690 = vst.msk [vmem:[#allocation2 + $0x40] sm:$0xff] %vm202, %v1681
        %1691 = vst.msk [vmem:[#allocation2 + $0x48] sm:$0x1] %vm200, 0.0
        %v1692 = vld [vmem:[%s908] ss:$2 sm:$0xff]
        %v1693 = vld [vmem:[%s910] ss:$2 sm:$0xff]
        %v1694 = vld [vmem:[%s912] ss:$2 sm:$0xff]
        %v1695 = vld [vmem:[%s914] ss:$2 sm:$0xff]
        %v1696 = vld [vmem:[%s940] ss:$2 sm:$0xff]
        %v1697 = vld [vmem:[%s942] ss:$2 sm:$0xff]
        %v1698 = vld [vmem:[%s944] ss:$2 sm:$0xff]
        %v1699 = vld [vmem:[%s946] ss:$2 sm:$0xff]
        %v1700 = vmax.f32 %v1692, %v1696
        %v1701 = vmax.f32 %v1693, %v1697
        %v1702 = vmax.f32 %v1694, %v1698
        %v1703 = vmax.f32 %v1695, %v1699
        %v1704 = vld [vmem:[%s988] ss:$2 sm:$0xff]
        %v1705 = vld [vmem:[%s990] ss:$2 sm:$0xff]
        %v1706 = vld [vmem:[%s992] ss:$2 sm:$0xff]
        %v1707 = vld [vmem:[%s994] ss:$2 sm:$0xff]
        %v1708 = vmax.f32 %v1700, %v1704
        %v1709 = vmax.f32 %v1701, %v1705
        %v1710 = vmax.f32 %v1702, %v1706
        %v1711 = vmax.f32 %v1703, %v1707
        %1712 = vst.msk [vmem:[#allocation2 + $0x7] sm:$0x1] %vm200, 0.0
        %1713 = vst.msk [vmem:[#allocation2 + $0x8] sm:$0xff] %vm202, %v1708
        %1714 = vst.msk [vmem:[#allocation2 + $0x10] sm:$0xff] %vm202, %v1709
        %1715 = vst.msk [vmem:[#allocation2 + $0x18] sm:$0xff] %vm202, %v1710
        %1716 = vst.msk [vmem:[#allocation2 + $0x20] sm:$0xff] %vm202, %v1711
        %1717 = vst.msk [vmem:[#allocation2 + $0x28] sm:$0x1] %vm200, 0.0
        %v1718 = vld [vmem:[#allocation2 + $0x7] sm:$0xff]
        %v1719 = vld [vmem:[#allocation2 + $0xf] sm:$0xff]
        %v1720 = vld [vmem:[#allocation2 + $0x17] sm:$0xff]
        %v1721 = vld [vmem:[#allocation2 + $0x1f] sm:$0xff]
        %v1722 = vld [vmem:[#allocation2 + $0x8] sm:$0xff]
        %v1723 = vld [vmem:[#allocation2 + $0x10] sm:$0xff]
        %v1724 = vld [vmem:[#allocation2 + $0x18] sm:$0xff]
        %v1725 = vld [vmem:[#allocation2 + $0x20] sm:$0xff]
        %v1726 = vld [vmem:[#allocation2 + $0x9] sm:$0xff]
        %v1727 = vld [vmem:[#allocation2 + $0x11] sm:$0xff]
        %v1728 = vld [vmem:[#allocation2 + $0x19] sm:$0xff]
        %v1729 = vld [vmem:[#allocation2 + $0x21] sm:$0xff]
        %1734 = vrot.lane.b32.xlu0 %v1722, 64
        %v1735 = vpop.permute.xlu0 %1734
        %1736 = vrot.lane.b32.xlu0 %v1723, 64
        %v1737 = vpop.permute.xlu0 %1736
        %1738 = vrot.lane.b32.xlu0 %v1724, 64
        %v1739 = vpop.permute.xlu0 %1738
        %1740 = vrot.lane.b32.xlu0 %v1725, 64
        %v1741 = vpop.permute.xlu0 %1740
        %v1746 = vsel %vm202, %v1718, %v1735
        %v1747 = vsel %vm202, %v1719, %v1737
        %v1748 = vsel %vm202, %v1720, %v1739
        %v1749 = vsel %vm202, %v1721, %v1741
        %s1750 = scalar_lea.vmem %s1, 576
        %v1751 = vld [vmem:[%s1750] sm:$0xff]
        %v1752 = vld [vmem:[%s1750 + $0x8] sm:$0xff]
        %v1753 = vld [vmem:[%s1750 + $0x10] sm:$0xff]
        %v1754 = vld [vmem:[%s1750 + $0x18] sm:$0xff]
        %v1755 = vld [vmem:[%s1750 + $0x20] sm:$0xff]
        %v1756 = vld [vmem:[%s1750 + $0x28] sm:$0xff]
        %v1757 = vld [vmem:[%s1750 + $0x30] sm:$0xff]
        %v1758 = vld [vmem:[%s1750 + $0x38] sm:$0xff]
        %v1759 = vld [vmem:[%s1750 + $0x40] sm:$0xff]
        %v1760 = vld [vmem:[%s1750 + $0x48] sm:$0xff]
        %v1761 = vld [vmem:[%s1750 + $0x50] sm:$0xff]
        %v1762 = vld [vmem:[%s1750 + $0x58] sm:$0xff]
        %v1763 = vld [vmem:[%s1750 + $0x60] sm:$0xff]
        %v1764 = vld [vmem:[%s1750 + $0x68] sm:$0xff]
        %v1765 = vld [vmem:[%s1750 + $0x70] sm:$0xff]
        %v1766 = vld [vmem:[%s1750 + $0x78] sm:$0xff]
        %v1767 = vld [vmem:[%s1750 + $0x80] sm:$0xff]
        %v1768 = vld [vmem:[%s1750 + $0x88] sm:$0xff]
        %v1769 = vld [vmem:[%s1750 + $0x90] sm:$0xff]
        %v1770 = vld [vmem:[%s1750 + $0x98] sm:$0xff]
        %v1771 = vld [vmem:[%s1750 + $0xa0] sm:$0xff]
        %v1772 = vld [vmem:[%s1750 + $0xa8] sm:$0xff]
        %v1773 = vld [vmem:[%s1750 + $0xb0] sm:$0xff]
        %v1774 = vld [vmem:[%s1750 + $0xb8] sm:$0xff]
        %s1775 = scalar_lea.vmem %s2, 3
        %v1776 = vld [vmem:[%s1775] sm:$0x1]
        %v1778 = vperm.slane %v1776, 0
        %v1781 = vsel %vm202, %v1726, 0
        %v1784 = vsel %vm202, %v1727, 0
        %v1787 = vsel %vm202, %v1728, 0
        %v1790 = vsel %vm202, %v1729, 0
        %1792 = vmatpush.msra.mxu0 %v1766
        %1793 = vmatpush.msra.mxu0 %v1765
        %1794 = vmatpush.msra.mxu0 %v1764
        %1795 = vmatpush.msra.mxu0 %v1763
        %1796 = vmatpush.msra.mxu0 %v1762
        %1797 = vmatpush.msra.mxu0 %v1761
        %1798 = vmatpush.msra.mxu0 %v1760
        %1799 = vmatpush.msra.mxu0 %v1759
        %1800 = vmatpush.msra.mxu0 %v1758
        %1801 = vmatpush.msra.mxu0 %v1757
        %1802 = vmatpush.msra.mxu0 %v1756
        %1803 = vmatpush.msra.mxu0 %v1755
        %1804 = vmatpush.msra.mxu0 %v1754
        %1805 = vmatpush.msra.mxu0 %v1753
        %1806 = vmatpush.msra.mxu0 %v1752
        %1807 = vmatpush.msra.mxu0 %v1751
        %1808 = vmatmul.f32.gmra.mxu0 %v1746
        %v1809 = vpop.f32.mrf.mxu0
        %v1810 = vadd.f32 %v1778, %v1809
        %1811 = vmatmul.f32.gmra.mxu0 %v1747
        %v1812 = vpop.f32.mrf.mxu0
        %v1813 = vadd.f32 %v1778, %v1812
        %1814 = vmatmul.f32.gmra.mxu0 %v1748
        %v1815 = vpop.f32.mrf.mxu0
        %v1816 = vadd.f32 %v1778, %v1815
        %1817 = vmatmul.f32.gmra.mxu0 %v1749
        %v1818 = vpop.f32.mrf.mxu0
        %v1819 = vadd.f32 %v1778, %v1818
        %1820 = vdwg.mxu0
        %1821 = vmatpush.msra.mxu0 0.0
        %1822 = vmatpush.msra.mxu0 0.0
        %1823 = vmatpush.msra.mxu0 0.0
        %1824 = vmatpush.msra.mxu0 0.0
        %1825 = vmatpush.msra.mxu0 0.0
        %1826 = vmatpush.msra.mxu0 0.0
        %1827 = vmatpush.msra.mxu0 0.0
        %1828 = vmatpush.msra.mxu0 0.0
        %1829 = vmatpush.msra.mxu0 %v1774
        %1830 = vmatpush.msra.mxu0 %v1773
        %1831 = vmatpush.msra.mxu0 %v1772
        %1832 = vmatpush.msra.mxu0 %v1771
        %1833 = vmatpush.msra.mxu0 %v1770
        %1834 = vmatpush.msra.mxu0 %v1769
        %1835 = vmatpush.msra.mxu0 %v1768
        %1836 = vmatpush.msra.mxu0 %v1767
        %1837 = vmatmul.f32.gmra.mxu0 %v1781
        %v1838 = vpop.f32.mrf.mxu0
        %v1839 = vadd.f32 %v1810, %v1838
        %1840 = vmatmul.f32.gmra.mxu0 %v1784
        %v1841 = vpop.f32.mrf.mxu0
        %v1842 = vadd.f32 %v1813, %v1841
        %1843 = vmatmul.f32.gmra.mxu0 %v1787
        %v1844 = vpop.f32.mrf.mxu0
        %v1845 = vadd.f32 %v1816, %v1844
        %1846 = vmatmul.f32.gmra.mxu0 %v1790
        %v1847 = vpop.f32.mrf.mxu0
        %v1848 = vadd.f32 %v1819, %v1847
        %1849 = vdwg.mxu0
        %v1850 = vmax.f32 %v1839, 0.0
        %v1851 = vmax.f32 %v1842, 0.0
        %v1852 = vmax.f32 %v1845, 0.0
        %v1853 = vmax.f32 %v1848, 0.0
        %1854 = vst.msk [vmem:[#allocation2 + $0x7] sm:$0x1] %vm200, 0.0
        %1855 = vst.msk [vmem:[#allocation2 + $0x8] sm:$0xff] %vm202, %v1850
        %1856 = vst.msk [vmem:[#allocation2 + $0x10] sm:$0xff] %vm202, %v1851
        %1857 = vst.msk [vmem:[#allocation2 + $0x18] sm:$0xff] %vm202, %v1852
        %1858 = vst.msk [vmem:[#allocation2 + $0x20] sm:$0xff] %vm202, %v1853
        %1859 = vst.msk [vmem:[#allocation2 + $0x28] sm:$0x1] %vm200, 0.0
        %v1860 = vld [vmem:[%s908] ss:$2 sm:$0xff]
        %v1861 = vld [vmem:[%s910] ss:$2 sm:$0xff]
        %v1862 = vld [vmem:[%s940] ss:$2 sm:$0xff]
        %v1863 = vld [vmem:[%s942] ss:$2 sm:$0xff]
        %v1864 = vmax.f32 %v1860, %v1862
        %v1865 = vmax.f32 %v1861, %v1863
        %v1866 = vld [vmem:[%s988] ss:$2 sm:$0xff]
        %v1867 = vld [vmem:[%s990] ss:$2 sm:$0xff]
        %v1868 = vmax.f32 %v1864, %v1866
        %v1869 = vmax.f32 %v1865, %v1867
        %1870 = vst.msk [vmem:[#allocation2 + $0x7] sm:$0x1] %vm200, 0.0
        %1871 = vst.msk [vmem:[#allocation2 + $0x8] sm:$0xff] %vm202, %v1868
        %1872 = vst.msk [vmem:[#allocation2 + $0x10] sm:$0xff] %vm202, %v1869
        %1873 = vst.msk [vmem:[#allocation2 + $0x18] sm:$0x1] %vm200, 0.0
        %v1874 = vld [vmem:[#allocation2 + $0x7] sm:$0xff]
        %v1875 = vld [vmem:[#allocation2 + $0xf] sm:$0xff]
        %v1876 = vld [vmem:[#allocation2 + $0x8] sm:$0xff]
        %v1877 = vld [vmem:[#allocation2 + $0x10] sm:$0xff]
        %v1878 = vld [vmem:[#allocation2 + $0x9] sm:$0xff]
        %v1879 = vld [vmem:[#allocation2 + $0x11] sm:$0xff]
        %1882 = vrot.lane.b32.xlu0 %v1876, 64
        %v1883 = vpop.permute.xlu0 %1882
        %1884 = vrot.lane.b32.xlu0 %v1877, 64
        %v1885 = vpop.permute.xlu0 %1884
        %v1888 = vsel %vm202, %v1874, %v1883
        %v1889 = vsel %vm202, %v1875, %v1885
        %s1890 = scalar_lea.vmem %s1, 768
        %v1891 = vld [vmem:[%s1890] sm:$0xff]
        %v1892 = vld [vmem:[%s1890 + $0x8] sm:$0xff]
        %v1893 = vld [vmem:[%s1890 + $0x10] sm:$0xff]
        %v1894 = vld [vmem:[%s1890 + $0x18] sm:$0xff]
        %v1895 = vld [vmem:[%s1890 + $0x20] sm:$0xff]
        %v1896 = vld [vmem:[%s1890 + $0x28] sm:$0xff]
        %v1897 = vld [vmem:[%s1890 + $0x30] sm:$0xff]
        %v1898 = vld [vmem:[%s1890 + $0x38] sm:$0xff]
        %v1899 = vld [vmem:[%s1890 + $0x40] sm:$0xff]
        %v1900 = vld [vmem:[%s1890 + $0x48] sm:$0xff]
        %v1901 = vld [vmem:[%s1890 + $0x50] sm:$0xff]
        %v1902 = vld [vmem:[%s1890 + $0x58] sm:$0xff]
        %v1903 = vld [vmem:[%s1890 + $0x60] sm:$0xff]
        %v1904 = vld [vmem:[%s1890 + $0x68] sm:$0xff]
        %v1905 = vld [vmem:[%s1890 + $0x70] sm:$0xff]
        %v1906 = vld [vmem:[%s1890 + $0x78] sm:$0xff]
        %v1907 = vld [vmem:[%s1890 + $0x80] sm:$0xff]
        %v1908 = vld [vmem:[%s1890 + $0x88] sm:$0xff]
        %v1909 = vld [vmem:[%s1890 + $0x90] sm:$0xff]
        %v1910 = vld [vmem:[%s1890 + $0x98] sm:$0xff]
        %v1911 = vld [vmem:[%s1890 + $0xa0] sm:$0xff]
        %v1912 = vld [vmem:[%s1890 + $0xa8] sm:$0xff]
        %v1913 = vld [vmem:[%s1890 + $0xb0] sm:$0xff]
        %v1914 = vld [vmem:[%s1890 + $0xb8] sm:$0xff]
        %s1915 = scalar_lea.vmem %s2, 4
        %v1916 = vld [vmem:[%s1915] sm:$0x1]
        %v1918 = vperm.slane %v1916, 0
        %v1921 = vsel %vm202, %v1878, 0
        %v1924 = vsel %vm202, %v1879, 0
        %1926 = vmatpush.msra.mxu0 %v1906
        %1927 = vmatpush.msra.mxu0 %v1905
        %1928 = vmatpush.msra.mxu0 %v1904
        %1929 = vmatpush.msra.mxu0 %v1903
        %1930 = vmatpush.msra.mxu0 %v1902
        %1931 = vmatpush.msra.mxu0 %v1901
        %1932 = vmatpush.msra.mxu0 %v1900
        %1933 = vmatpush.msra.mxu0 %v1899
        %1934 = vmatpush.msra.mxu0 %v1898
        %1935 = vmatpush.msra.mxu0 %v1897
        %1936 = vmatpush.msra.mxu0 %v1896
        %1937 = vmatpush.msra.mxu0 %v1895
        %1938 = vmatpush.msra.mxu0 %v1894
        %1939 = vmatpush.msra.mxu0 %v1893
        %1940 = vmatpush.msra.mxu0 %v1892
        %1941 = vmatpush.msra.mxu0 %v1891
        %1942 = vmatmul.f32.gmra.mxu0 %v1888
        %v1943 = vpop.f32.mrf.mxu0
        %v1944 = vadd.f32 %v1918, %v1943
        %1945 = vmatmul.f32.gmra.mxu0 %v1889
        %v1946 = vpop.f32.mrf.mxu0
        %v1947 = vadd.f32 %v1918, %v1946
        %1948 = vdwg.mxu0
        %1949 = vmatpush.msra.mxu0 0.0
        %1950 = vmatpush.msra.mxu0 0.0
        %1951 = vmatpush.msra.mxu0 0.0
        %1952 = vmatpush.msra.mxu0 0.0
        %1953 = vmatpush.msra.mxu0 0.0
        %1954 = vmatpush.msra.mxu0 0.0
        %1955 = vmatpush.msra.mxu0 0.0
        %1956 = vmatpush.msra.mxu0 0.0
        %1957 = vmatpush.msra.mxu0 %v1914
        %1958 = vmatpush.msra.mxu0 %v1913
        %1959 = vmatpush.msra.mxu0 %v1912
        %1960 = vmatpush.msra.mxu0 %v1911
        %1961 = vmatpush.msra.mxu0 %v1910
        %1962 = vmatpush.msra.mxu0 %v1909
        %1963 = vmatpush.msra.mxu0 %v1908
        %1964 = vmatpush.msra.mxu0 %v1907
        %1965 = vmatmul.f32.gmra.mxu0 %v1921
        %v1966 = vpop.f32.mrf.mxu0
        %v1967 = vadd.f32 %v1944, %v1966
        %1968 = vmatmul.f32.gmra.mxu0 %v1924
        %v1969 = vpop.f32.mrf.mxu0
        %v1970 = vadd.f32 %v1947, %v1969
        %1971 = vdwg.mxu0
        %v1972 = vmax.f32 %v1967, 0.0
        %v1973 = vmax.f32 %v1970, 0.0
        %1974 = vst.msk [vmem:[#allocation2 + $0x7] sm:$0x1] %vm200, 0.0
        %1975 = vst.msk [vmem:[#allocation2 + $0x8] sm:$0xff] %vm202, %v1972
        %1976 = vst.msk [vmem:[#allocation2 + $0x10] sm:$0xff] %vm202, %v1973
        %1977 = vst.msk [vmem:[#allocation2 + $0x18] sm:$0x1] %vm200, 0.0
        %v1978 = vld [vmem:[%s908] ss:$2 sm:$0xff]
        %v1979 = vld [vmem:[%s940] ss:$2 sm:$0xff]
        %v1980 = vmax.f32 %v1978, %v1979
        %v1981 = vld [vmem:[%s988] ss:$2 sm:$0xff]
        %v1982 = vmax.f32 %v1980, %v1981
        %1983 = vst.msk [vmem:[#allocation2 + $0x7] sm:$0x1] %vm200, 0.0
        %1984 = vst.msk [vmem:[#allocation2 + $0x8] sm:$0xff] %vm202, %v1982
        %1985 = vst.msk [vmem:[#allocation2 + $0x10] sm:$0x1] %vm200, 0.0
        %v1986 = vld [vmem:[#allocation2 + $0x7] sm:$0xff]
        %v1987 = vld [vmem:[#allocation2 + $0x8] sm:$0xff]
        %v1988 = vld [vmem:[#allocation2 + $0x9] sm:$0xff]
        %1990 = vrot.lane.b32.xlu0 %v1987, 64
        %v1991 = vpop.permute.xlu0 %1990
        %v1993 = vsel %vm202, %v1986, %v1991
        %s1994 = scalar_lea.vmem %s1, 960
        %v1995 = vld [vmem:[%s1994] sm:$0xff]
        %v1996 = vld [vmem:[%s1994 + $0x8] sm:$0xff]
        %v1997 = vld [vmem:[%s1994 + $0x10] sm:$0xff]
        %v1998 = vld [vmem:[%s1994 + $0x18] sm:$0xff]
        %v1999 = vld [vmem:[%s1994 + $0x20] sm:$0xff]
        %v2000 = vld [vmem:[%s1994 + $0x28] sm:$0xff]
        %v2001 = vld [vmem:[%s1994 + $0x30] sm:$0xff]
        %v2002 = vld [vmem:[%s1994 + $0x38] sm:$0xff]
        %v2003 = vld [vmem:[%s1994 + $0x40] sm:$0xff]
        %v2004 = vld [vmem:[%s1994 + $0x48] sm:$0xff]
        %v2005 = vld [vmem:[%s1994 + $0x50] sm:$0xff]
        %v2006 = vld [vmem:[%s1994 + $0x58] sm:$0xff]
        %v2007 = vld [vmem:[%s1994 + $0x60] sm:$0xff]
        %v2008 = vld [vmem:[%s1994 + $0x68] sm:$0xff]
        %v2009 = vld [vmem:[%s1994 + $0x70] sm:$0xff]
        %v2010 = vld [vmem:[%s1994 + $0x78] sm:$0xff]
        %v2011 = vld [vmem:[%s1994 + $0x80] sm:$0xff]
        %v2012 = vld [vmem:[%s1994 + $0x88] sm:$0xff]
        %v2013 = vld [vmem:[%s1994 + $0x90] sm:$0xff]
        %v2014 = vld [vmem:[%s1994 + $0x98] sm:$0xff]
        %v2015 = vld [vmem:[%s1994 + $0xa0] sm:$0xff]
        %v2016 = vld [vmem:[%s1994 + $0xa8] sm:$0xff]
        %v2017 = vld [vmem:[%s1994 + $0xb0] sm:$0xff]
        %v2018 = vld [vmem:[%s1994 + $0xb8] sm:$0xff]
        %s2019 = scalar_lea.vmem %s2, 5
        %v2020 = vld [vmem:[%s2019] sm:$0x1]
        %v2022 = vperm.slane %v2020, 0
        %v2025 = vsel %vm202, %v1988, 0
        %2027 = vmatpush.msra.mxu0 %v2010
        %2028 = vmatpush.msra.mxu0 %v2009
        %2029 = vmatpush.msra.mxu0 %v2008
        %2030 = vmatpush.msra.mxu0 %v2007
        %2031 = vmatpush.msra.mxu0 %v2006
        %2032 = vmatpush.msra.mxu0 %v2005
        %2033 = vmatpush.msra.mxu0 %v2004
        %2034 = vmatpush.msra.mxu0 %v2003
        %2035 = vmatpush.msra.mxu0 %v2002
        %2036 = vmatpush.msra.mxu0 %v2001
        %2037 = vmatpush.msra.mxu0 %v2000
        %2038 = vmatpush.msra.mxu0 %v1999
        %2039 = vmatpush.msra.mxu0 %v1998
        %2040 = vmatpush.msra.mxu0 %v1997
        %2041 = vmatpush.msra.mxu0 %v1996
        %2042 = vmatpush.msra.mxu0 %v1995
        %2043 = vmatmul.f32.gmra.mxu0 %v1993
        %v2044 = vpop.f32.mrf.mxu0
        %v2045 = vadd.f32 %v2022, %v2044
        %2046 = vdwg.mxu0
        %2047 = vmatpush.msra.mxu0 0.0
        %2048 = vmatpush.msra.mxu0 0.0
        %2049 = vmatpush.msra.mxu0 0.0
        %2050 = vmatpush.msra.mxu0 0.0
        %2051 = vmatpush.msra.mxu0 0.0
        %2052 = vmatpush.msra.mxu0 0.0
        %2053 = vmatpush.msra.mxu0 0.0
        %2054 = vmatpush.msra.mxu0 0.0
        %2055 = vmatpush.msra.mxu0 %v2018
        %2056 = vmatpush.msra.mxu0 %v2017
        %2057 = vmatpush.msra.mxu0 %v2016
        %2058 = vmatpush.msra.mxu0 %v2015
        %2059 = vmatpush.msra.mxu0 %v2014
        %2060 = vmatpush.msra.mxu0 %v2013
        %2061 = vmatpush.msra.mxu0 %v2012
        %2062 = vmatpush.msra.mxu0 %v2011
        %2063 = vmatmul.f32.gmra.mxu0 %v2025
        %v2064 = vpop.f32.mrf.mxu0
        %v2065 = vadd.f32 %v2045, %v2064
        %2066 = vdwg.mxu0
        %v2067 = vmax.f32 %v2065, 0.0
        %2068 = vst.msk [vmem:[#allocation2 + $0x7] sm:$0x1] %vm200, 0.0
        %2069 = vst.msk [vmem:[#allocation2 + $0x8] sm:$0xff] %vm202, %v2067
        %2070 = vst.msk [vmem:[#allocation2 + $0x10] sm:$0x1] %vm200, 0.0
        %v2071 = vld [vmem:[%s908] ss:$2 sm:$0xf]
        %v2072 = vld [vmem:[%s940] ss:$2 sm:$0xf]
        %v2073 = vmax.f32 %v2071, %v2072
        %v2074 = vld [vmem:[%s988] ss:$2 sm:$0xf]
        %v2075 = vmax.f32 %v2073, %v2074
        %2076 = vst.msk [vmem:[#allocation2 + $0x7] sm:$0x1] %vm200, 0.0
        %vm2077 = vcmask 519168
        %2078 = vst.msk [vmem:[#allocation2 + $0x8] sm:$0xf] %vm2077, %v2075
        %2079 = vst.msk [vmem:[#allocation2 + $0xc] sm:$0x1] %vm200, 0.0
        %v2080 = vld [vmem:[#allocation2 + $0x7] sm:$0xf]
        %v2081 = vld [vmem:[#allocation2 + $0x8] sm:$0xf]
        %v2082 = vld [vmem:[#allocation2 + $0x9] sm:$0xf]
        %2084 = vrot.lane.b32.xlu0 %v2081, 64
        %v2085 = vpop.permute.xlu0 %2084
        %v2087 = vsel %vm202, %v2080, %v2085
        %s2088 = scalar_lea.vmem %s1, 1152
        %v2089 = vld [vmem:[%s2088] sm:$0xff]
        %v2090 = vld [vmem:[%s2088 + $0x8] sm:$0xff]
        %v2091 = vld [vmem:[%s2088 + $0x10] sm:$0xff]
        %v2092 = vld [vmem:[%s2088 + $0x18] sm:$0xff]
        %v2093 = vld [vmem:[%s2088 + $0x20] sm:$0xff]
        %v2094 = vld [vmem:[%s2088 + $0x28] sm:$0xff]
        %v2095 = vld [vmem:[%s2088 + $0x30] sm:$0xff]
        %v2096 = vld [vmem:[%s2088 + $0x38] sm:$0xff]
        %v2097 = vld [vmem:[%s2088 + $0x40] sm:$0xff]
        %v2098 = vld [vmem:[%s2088 + $0x48] sm:$0xff]
        %v2099 = vld [vmem:[%s2088 + $0x50] sm:$0xff]
        %v2100 = vld [vmem:[%s2088 + $0x58] sm:$0xff]
        %v2101 = vld [vmem:[%s2088 + $0x60] sm:$0xff]
        %v2102 = vld [vmem:[%s2088 + $0x68] sm:$0xff]
        %v2103 = vld [vmem:[%s2088 + $0x70] sm:$0xff]
        %v2104 = vld [vmem:[%s2088 + $0x78] sm:$0xff]
        %v2105 = vld [vmem:[%s2088 + $0x80] sm:$0xff]
        %v2106 = vld [vmem:[%s2088 + $0x88] sm:$0xff]
        %v2107 = vld [vmem:[%s2088 + $0x90] sm:$0xff]
        %v2108 = vld [vmem:[%s2088 + $0x98] sm:$0xff]
        %v2109 = vld [vmem:[%s2088 + $0xa0] sm:$0xff]
        %v2110 = vld [vmem:[%s2088 + $0xa8] sm:$0xff]
        %v2111 = vld [vmem:[%s2088 + $0xb0] sm:$0xff]
        %v2112 = vld [vmem:[%s2088 + $0xb8] sm:$0xff]
        %s2113 = scalar_lea.vmem %s2, 6
        %v2114 = vld [vmem:[%s2113] sm:$0x1]
        %v2116 = vperm.slane %v2114, 0
        %v2119 = vsel %vm202, %v2082, 0
        %2121 = vmatpush.msra.mxu0 %v2104
        %2122 = vmatpush.msra.mxu0 %v2103
        %2123 = vmatpush.msra.mxu0 %v2102
        %2124 = vmatpush.msra.mxu0 %v2101
        %2125 = vmatpush.msra.mxu0 %v2100
        %2126 = vmatpush.msra.mxu0 %v2099
        %2127 = vmatpush.msra.mxu0 %v2098
        %2128 = vmatpush.msra.mxu0 %v2097
        %2129 = vmatpush.msra.mxu0 %v2096
        %2130 = vmatpush.msra.mxu0 %v2095
        %2131 = vmatpush.msra.mxu0 %v2094
        %2132 = vmatpush.msra.mxu0 %v2093
        %2133 = vmatpush.msra.mxu0 %v2092
        %2134 = vmatpush.msra.mxu0 %v2091
        %2135 = vmatpush.msra.mxu0 %v2090
        %2136 = vmatpush.msra.mxu0 %v2089
        %2137 = vmatmul.f32.gmra.mxu0 %v2087
        %v2138 = vpop.f32.mrf.mxu0
        %v2139 = vadd.f32 %v2116, %v2138
        %2140 = vdwg.mxu0
        %2141 = vmatpush.msra.mxu0 0.0
        %2142 = vmatpush.msra.mxu0 0.0
        %2143 = vmatpush.msra.mxu0 0.0
        %2144 = vmatpush.msra.mxu0 0.0
        %2145 = vmatpush.msra.mxu0 0.0
        %2146 = vmatpush.msra.mxu0 0.0
        %2147 = vmatpush.msra.mxu0 0.0
        %2148 = vmatpush.msra.mxu0 0.0
        %2149 = vmatpush.msra.mxu0 %v2112
        %2150 = vmatpush.msra.mxu0 %v2111
        %2151 = vmatpush.msra.mxu0 %v2110
        %2152 = vmatpush.msra.mxu0 %v2109
        %2153 = vmatpush.msra.mxu0 %v2108
        %2154 = vmatpush.msra.mxu0 %v2107
        %2155 = vmatpush.msra.mxu0 %v2106
        %2156 = vmatpush.msra.mxu0 %v2105
        %2157 = vmatmul.f32.gmra.mxu0 %v2119
        %v2158 = vpop.f32.mrf.mxu0
        %v2159 = vadd.f32 %v2139, %v2158
        %2160 = vdwg.mxu0
        %v2161 = vmax.f32 %v2159, 0.0
        %2162 = vst.msk [vmem:[#allocation2 + $0x7] sm:$0x1] %vm200, 0.0
        %2163 = vst.msk [vmem:[#allocation2 + $0x8] sm:$0xf] %vm2077, %v2161
        %2164 = vst.msk [vmem:[#allocation2 + $0xc] sm:$0x1] %vm200, 0.0
        %v2165 = vld [vmem:[%s908] ss:$2 sm:$0x3]
        %v2166 = vld [vmem:[%s940] ss:$2 sm:$0x3]
        %v2167 = vmax.f32 %v2165, %v2166
        %v2168 = vld [vmem:[%s988] ss:$2 sm:$0x3]
        %v2169 = vmax.f32 %v2167, %v2168
        %2170 = vst.msk [vmem:[#allocation2 + $0x7] sm:$0x1] %vm200, 0.0
        %vm2171 = vcmask 517120
        %2172 = vst.msk [vmem:[#allocation2 + $0x8] sm:$0x3] %vm2171, %v2169
        %2173 = vst.msk [vmem:[#allocation2 + $0xa] sm:$0x1] %vm200, 0.0
        %v2174 = vld [vmem:[#allocation2 + $0x7] sm:$0x3]
        %v2175 = vld [vmem:[#allocation2 + $0x8] sm:$0x3]
        %v2176 = vld [vmem:[#allocation2 + $0x9] sm:$0x3]
        %2178 = vrot.lane.b32.xlu0 %v2175, 64
        %v2179 = vpop.permute.xlu0 %2178
        %v2181 = vsel %vm202, %v2174, %v2179
        %s2182 = scalar_lea.vmem %s1, 1344
        %v2183 = vld [vmem:[%s2182] sm:$0xff]
        %v2184 = vld [vmem:[%s2182 + $0x8] sm:$0xff]
        %v2185 = vld [vmem:[%s2182 + $0x10] sm:$0xff]
        %v2186 = vld [vmem:[%s2182 + $0x18] sm:$0xff]
        %v2187 = vld [vmem:[%s2182 + $0x20] sm:$0xff]
        %v2188 = vld [vmem:[%s2182 + $0x28] sm:$0xff]
        %v2189 = vld [vmem:[%s2182 + $0x30] sm:$0xff]
        %v2190 = vld [vmem:[%s2182 + $0x38] sm:$0xff]
        %v2191 = vld [vmem:[%s2182 + $0x40] sm:$0xff]
        %v2192 = vld [vmem:[%s2182 + $0x48] sm:$0xff]
        %v2193 = vld [vmem:[%s2182 + $0x50] sm:$0xff]
        %v2194 = vld [vmem:[%s2182 + $0x58] sm:$0xff]
        %v2195 = vld [vmem:[%s2182 + $0x60] sm:$0xff]
        %v2196 = vld [vmem:[%s2182 + $0x68] sm:$0xff]
        %v2197 = vld [vmem:[%s2182 + $0x70] sm:$0xff]
        %v2198 = vld [vmem:[%s2182 + $0x78] sm:$0xff]
        %v2199 = vld [vmem:[%s2182 + $0x80] sm:$0xff]
        %v2200 = vld [vmem:[%s2182 + $0x88] sm:$0xff]
        %v2201 = vld [vmem:[%s2182 + $0x90] sm:$0xff]
        %v2202 = vld [vmem:[%s2182 + $0x98] sm:$0xff]
        %v2203 = vld [vmem:[%s2182 + $0xa0] sm:$0xff]
        %v2204 = vld [vmem:[%s2182 + $0xa8] sm:$0xff]
        %v2205 = vld [vmem:[%s2182 + $0xb0] sm:$0xff]
        %v2206 = vld [vmem:[%s2182 + $0xb8] sm:$0xff]
        %s2207 = scalar_lea.vmem %s2, 7
        %v2208 = vld [vmem:[%s2207] sm:$0x1]
        %v2210 = vperm.slane %v2208, 0
        %v2213 = vsel %vm202, %v2176, 0
        %2215 = vmatpush.msra.mxu0 %v2198
        %2216 = vmatpush.msra.mxu0 %v2197
        %2217 = vmatpush.msra.mxu0 %v2196
        %2218 = vmatpush.msra.mxu0 %v2195
        %2219 = vmatpush.msra.mxu0 %v2194
        %2220 = vmatpush.msra.mxu0 %v2193
        %2221 = vmatpush.msra.mxu0 %v2192
        %2222 = vmatpush.msra.mxu0 %v2191
        %2223 = vmatpush.msra.mxu0 %v2190
        %2224 = vmatpush.msra.mxu0 %v2189
        %2225 = vmatpush.msra.mxu0 %v2188
        %2226 = vmatpush.msra.mxu0 %v2187
        %2227 = vmatpush.msra.mxu0 %v2186
        %2228 = vmatpush.msra.mxu0 %v2185
        %2229 = vmatpush.msra.mxu0 %v2184
        %2230 = vmatpush.msra.mxu0 %v2183
        %2231 = vmatmul.f32.gmra.mxu0 %v2181
        %v2232 = vpop.f32.mrf.mxu0
        %v2233 = vadd.f32 %v2210, %v2232
        %2234 = vdwg.mxu0
        %2235 = vmatpush.msra.mxu0 0.0
        %2236 = vmatpush.msra.mxu0 0.0
        %2237 = vmatpush.msra.mxu0 0.0
        %2238 = vmatpush.msra.mxu0 0.0
        %2239 = vmatpush.msra.mxu0 0.0
        %2240 = vmatpush.msra.mxu0 0.0
        %2241 = vmatpush.msra.mxu0 0.0
        %2242 = vmatpush.msra.mxu0 0.0
        %2243 = vmatpush.msra.mxu0 %v2206
        %2244 = vmatpush.msra.mxu0 %v2205
        %2245 = vmatpush.msra.mxu0 %v2204
        %2246 = vmatpush.msra.mxu0 %v2203
        %2247 = vmatpush.msra.mxu0 %v2202
        %2248 = vmatpush.msra.mxu0 %v2201
        %2249 = vmatpush.msra.mxu0 %v2200
        %2250 = vmatpush.msra.mxu0 %v2199
        %2251 = vmatmul.f32.gmra.mxu0 %v2213
        %v2252 = vpop.f32.mrf.mxu0
        %v2253 = vadd.f32 %v2233, %v2252
        %2254 = vdwg.mxu0
        %v2255 = vmax.f32 %v2253, 0.0
        %2256 = vst.msk [vmem:[#allocation2 + $0x7] sm:$0x1] %vm200, 0.0
        %2257 = vst.msk [vmem:[#allocation2 + $0x8] sm:$0x3] %vm2171, %v2255
        %2258 = vst.msk [vmem:[#allocation2 + $0xa] sm:$0x1] %vm200, 0.0
        %v2259 = vld [vmem:[%s908] ss:$2 sm:$0x1]
        %v2260 = vld [vmem:[%s940] ss:$2 sm:$0x1]
        %v2261 = vmax.f32 %v2259, %v2260
        %v2262 = vld [vmem:[%s988] ss:$2 sm:$0x1]
        %v2263 = vmax.f32 %v2261, %v2262
        %2264 = vst.msk [vmem:[%s162] sm:$0x1] %vm200, %v2263
        %s2265 = sand.u32 %s93, 1
        %s2266 = scalar_lea.sflag [#allocation4], %s2265
        %s2267 = sand.u32 %s93, 1
        %s2268 = scalar_lea.vmem [#allocation3], %s2267
        // Predicated region
        $region33: #{feature_extraction.1} parent=31 // pred_check
          %p2269 = pneg %p103
        $region34: #{feature_extraction.1} parent=31 // pred_check_branch
          %2271 = sbr.rel (%p2269) target = $region36
        $region35: #{feature_extraction.1} parent=31 // pred_region
          %2273 = vsyncadd %s2266, 0
          %s2274 = scalar_lea.hbm %s3, %s17
          %s2276 = sshll.u32 %s2268, 4
          %s2277 = int_to_ptr.vmem [resolvable:$true] %s2276
          %s2278 = sshll.u32 %s2274, 4
          %s2279 = int_to_ptr.hbm [resolvable:$true] %s2278
          %2281 = dma.vmem_to_hbm [thread:$0]  %s2277, 16, %s2279, %s2266
        $region36: #{feature_extraction.1} parent=31 // pred_fallthru
          _
      $region32: #{feature_extraction.1} parent=5 // pred_fallthru
        _
      %p2282 = scmp.le.s32.totalorder 2, %s12
      // Predicated region
      $region37: #{feature_extraction.1} parent=5 // pred_check
        %p2283 = pneg %p2282
      $region38: #{feature_extraction.1} parent=5 // pred_check_branch
        %2285 = sbr.rel (%p2283) target = $region40
      $region39: #{feature_extraction.1} parent=5 // pred_region
        %s2286 = ssub.s32 %s12, 2
        // Predicated region
        $region41: #{feature_extraction.1} parent=39 // pred_check
          %p2287 = pneg %p109
        $region42: #{feature_extraction.1} parent=39 // pred_check_branch
          %2289 = sbr.rel (%p2287) target = $region44
        $region43: #{feature_extraction.1} parent=39 // pred_region
          %s2290 = sand.u32 %s94, 1
          %s2291 = scalar_lea.sflag [#allocation4], %s2290
          %s2292 = sand.u32 %s94, 1
          %s2293 = scalar_lea.vmem [#allocation3], %s2292
          %2295 = dma.done %s2291, 16
        $region44: #{feature_extraction.1} parent=39 // pred_fallthru
          _
      $region40: #{feature_extraction.1} parent=5 // pred_fallthru
        _
    $region6: #{feature_extraction.1} parent=1 // loop_footer
      %s16 = sadd.s32 1, %s12
    $region7: #{feature_extraction.1} parent=1 // loop_footer_branch
      %11 = sbr.rel target = $region3
    $region8: #{feature_extraction.1} parent=1 // loop_exit
      _
    %2296 = vsyncpa [#allocation4], 1
    %s2297 = scalar_lea.sflag [#allocation4], 1
    %2298 = vsyncpa %s2297, 1

</llo_original>
